<compile_context>
chip_gen: v6e
topology: v6e:2x2x1
jax: 0.10.0
libtpu: 0.0.40
codegen_flags: <defaults>
</compile_context>

<pallas_src>
import functools

import jax
import jax.numpy as jnp
from jax import lax
from jax.experimental import pallas as pl
from jax.experimental.pallas import tpu as pltpu

LEAKY_SLOPE = 0.2
BN_EPS = 1e-5


# ---------------------------------------------------------------------------
# Kernel 1: im2col-in-VMEM + single fused (2*Cout, 9*Cin) x (9*Cin, M) bf16 MXU dot,
#           LeakyReLU * sigmoid gate, per-strip BatchNorm partial statistics,
#           channel-major lane-dense bf16 output.
# ---------------------------------------------------------------------------
def gated_conv_kernel(xs_ref, w_ref, b_ref, vmask_ref, g_ref, sum_ref, ssq_ref, bt_ref,
                      *, KH, KW, Cin, Cout, Wrow, Mp):
    # xs_ref:    (1, 1, Cin, LS) bf16   flat, zero-padded, x2-upsampled strip (+halo rows)
    # w_ref:     (2*Cout, KH*KW*Cin) bf16 fused conv|mask weight, K ordered (kh, kw, cin)
    # b_ref:     (2*Cout, 1) f32        fused biases
    # vmask_ref: (1, Mp) f32            1.0 on real columns, 0.0 on row-pad columns
    # g_ref:     (1, Cout, Mp) bf16     gated activation (channel-major, lane-dense)
    # sum_ref/ssq_ref: (1, 1, Cout, 1) f32 per-strip BN partial statistics
    # bt_ref:    (KH*KW*Cin, Mp) bf16   VMEM im2col scratch for this strip
    for kh in range(KH):                                    # static, unrolled at trace time
        for kw in range(KW):
            tap = kh * KW + kw
            off = kh * Wrow + kw                            # flat tap offset (static)
            bt_ref[tap * Cin:(tap + 1) * Cin, :] = xs_ref[0, 0, :, off:off + Mp]

    acc = jnp.dot(w_ref[...], bt_ref[...],
                  preferred_element_type=jnp.float32)       # (2*Cout, Mp), K = 9*Cin
    acc = acc + b_ref[...]

    conv = acc[:Cout, :]
    mask = acc[Cout:, :]
    act = jnp.where(conv > 0, conv, LEAKY_SLOPE * conv)     # LeakyReLU(0.2)
    gated = act * jax.nn.sigmoid(mask)                      # sigmoid -> EUP slot, lane-dense

    gm = gated * vmask_ref[...]                             # exclude pad columns from BN stats
    sum_ref[0, 0] = jnp.sum(gm, axis=1, keepdims=True)      # (Cout, 1)
    ssq_ref[0, 0] = jnp.sum(gm * gm, axis=1, keepdims=True)
    g_ref[0] = gated.astype(jnp.bfloat16)                   # (Cout, Mp), unmasked lane-dense store


# ---------------------------------------------------------------------------
# Kernel 2: apply BatchNorm affine (scale/shift precomputed), strip the row-pad
#           columns, cast bf16 -> f32 and write the final NCHW tensor.
# ---------------------------------------------------------------------------
def bn_apply_kernel(g_ref, scale_ref, shift_ref, o_ref, *, Wo):
    # g_ref: (1, Cout, SH, Wrow) bf16; scale/shift: (Cout, 1, 1) f32; o_ref: (1, Cout, SH, Wo) f32
    g = g_ref[0, :, :, :Wo].astype(jnp.float32)
    o_ref[0] = g * scale_ref[...] + shift_ref[...]


# ---------------------------------------------------------------------------
# Wrapper: cheap XLA glue (upsample/pad/strip windows, weight fusion, stats reduce),
#          hot path in Pallas.  Accepts / returns NCHW to match the PyTorch module.
# ---------------------------------------------------------------------------
def gated_deconv2d(x_nchw, w_conv, b_conv, w_mask, b_mask, bn_gamma, bn_beta):
    N, Cin, H, W = x_nchw.shape
    Cout, _, KH, KW = w_conv.shape
    Ho, Wo = 2 * H, 2 * W                                   # k=3, stride=1, pad=1 -> same size
    Wrow = ((Wo + 2 + 7) // 8) * 8                          # padded row stride (>= Wo+2, mult of 8)
    SH = 16 if (Ho % 16 == 0 and Ho > 16) else Ho           # output rows per strip
    n_strips = Ho // SH
    Mp = SH * Wrow                                          # flat (padded) positions per strip
    LS = (SH + 2) * Wrow + 8                                # strip window incl. halo + tap overrun

    # Nearest x2 upsample + zero pad + per-strip halo windows, in bf16 channel-planar layout
    # (no transpose of the activations; all in-kernel accesses stay static slices).
    # TODO(synk): fold the x2 nearest upsample into the kernel (polyphase / in-VMEM expand) so the
    #             upsampled tensor is never materialized in HBM.
    xb = x_nchw.astype(jnp.bfloat16)
    xu = jnp.repeat(jnp.repeat(xb, 2, axis=2), 2, axis=3)                 # (N, Cin, Ho, Wo)
    xp = jnp.pad(xu, ((0, 0), (0, 0), (1, 2), (1, Wrow - Wo - 1)))        # (N, Cin, Ho+3, Wrow)
    xflat = xp.reshape(N, Cin, (Ho + 3) * Wrow)
    xstrips = jnp.stack([xflat[:, :, s * Mp: s * Mp + LS] for s in range(n_strips)],
                        axis=1)                                           # (N, n_strips, Cin, LS)

    # Fused conv|mask weight, channel-major LHS: (2*Cout, KH*KW*Cin), K ordered (kh, kw, cin).
    wc = jnp.transpose(w_conv, (0, 2, 3, 1)).reshape(Cout, KH * KW * Cin)
    wm = jnp.transpose(w_mask, (0, 2, 3, 1)).reshape(Cout, KH * KW * Cin)
    w_fused = jnp.concatenate([wc, wm], axis=0).astype(jnp.bfloat16)
    b_fused = jnp.concatenate([b_conv, b_mask]).reshape(2 * Cout, 1).astype(jnp.float32)

    # 1.0 on real output columns, 0.0 on the (Wrow - Wo) pad columns of every row.
    vmask = jnp.tile((jnp.arange(Wrow) < Wo).astype(jnp.float32), SH).reshape(1, Mp)

    kernel1 = functools.partial(gated_conv_kernel, KH=KH, KW=KW, Cin=Cin, Cout=Cout,
                                Wrow=Wrow, Mp=Mp)
    k1_flops = 2 * N * Ho * Wrow * (KH * KW * Cin) * (2 * Cout)
    k1_bytes = (2 * N * n_strips * Cin * LS + 2 * 2 * Cout * KH * KW * Cin + 4 * 2 * Cout
                + 4 * Mp + 2 * N * Cout * Ho * Wrow + 4 * 2 * N * n_strips * Cout)

    gated, s_part, ssq_part = pl.pallas_call(
        kernel1,
        out_shape=(jax.ShapeDtypeStruct((N, Cout, Ho * Wrow), jnp.bfloat16),
                   jax.ShapeDtypeStruct((N, n_strips, Cout, 1), jnp.float32),
                   jax.ShapeDtypeStruct((N, n_strips, Cout, 1), jnp.float32)),
        grid=(N, n_strips),
        in_specs=[pl.BlockSpec((1, 1, Cin, LS), lambda n, s: (n, s, 0, 0)),
                  pl.BlockSpec((2 * Cout, KH * KW * Cin), lambda n, s: (0, 0)),
                  pl.BlockSpec((2 * Cout, 1), lambda n, s: (0, 0)),
                  pl.BlockSpec((1, Mp), lambda n, s: (0, 0))],
        out_specs=(pl.BlockSpec((1, Cout, Mp), lambda n, s: (n, 0, s)),
                   pl.BlockSpec((1, 1, Cout, 1), lambda n, s: (n, s, 0, 0)),
                   pl.BlockSpec((1, 1, Cout, 1), lambda n, s: (n, s, 0, 0))),
        scratch_shapes=[pltpu.VMEM((KH * KW * Cin, Mp), jnp.bfloat16)],
        compiler_params=pltpu.CompilerParams(
            dimension_semantics=("parallel", "parallel"),
            vmem_limit_bytes=32 * 1024 * 1024),
        cost_estimate=pl.CostEstimate(flops=k1_flops,
                                      transcendentals=N * Ho * Wrow * Cout,
                                      bytes_accessed=k1_bytes),
    )(xstrips, w_fused, b_fused, vmask)

    # BatchNorm batch statistics (training-mode semantics, biased variance) -- scalar XLA glue.
    # TODO(synk): running_mean/running_var momentum bookkeeping (inference state) is omitted.
    m_total = N * Ho * Wo
    s = jnp.sum(s_part[:, :, :, 0], axis=(0, 1))
    ssq = jnp.sum(ssq_part[:, :, :, 0], axis=(0, 1))
    mean = s / m_total
    var = jnp.maximum(ssq / m_total - mean * mean, 0.0)     # guard E[x^2]-E[x]^2 cancellation
    inv_std = lax.rsqrt(var + BN_EPS)
    scale = (bn_gamma * inv_std).reshape(Cout, 1, 1).astype(jnp.float32)
    shift = (bn_beta - mean * bn_gamma * inv_std).reshape(Cout, 1, 1).astype(jnp.float32)

    k2_bytes = 2 * N * Cout * Ho * Wrow + 4 * N * Cout * Ho * Wo + 4 * 2 * Cout
    out = pl.pallas_call(
        functools.partial(bn_apply_kernel, Wo=Wo),
        out_shape=jax.ShapeDtypeStruct((N, Cout, Ho, Wo), jnp.float32),
        grid=(N, n_strips),
        in_specs=[pl.BlockSpec((1, Cout, SH, Wrow), lambda n, s: (n, 0, s, 0)),
                  pl.BlockSpec((Cout, 1, 1), lambda n, s: (0, 0, 0)),
                  pl.BlockSpec((Cout, 1, 1), lambda n, s: (0, 0, 0))],
        out_specs=pl.BlockSpec((1, Cout, SH, Wo), lambda n, s: (n, 0, s, 0)),
        compiler_params=pltpu.CompilerParams(
            dimension_semantics=("parallel", "parallel"),
            vmem_limit_bytes=32 * 1024 * 1024),
        cost_estimate=pl.CostEstimate(flops=2 * N * Cout * Ho * Wo, transcendentals=0,
                                      bytes_accessed=k2_bytes),
    )(gated.reshape(N, Cout, Ho, Wrow), scale, shift)

    return out                                              # already NCHW, no trailing XLA op


# ---------------------------------------------------------------------------
# Pure-JAX reference for verification.  The matmul operands are bf16-rounded exactly like the
# kernel's MXU operands (per the perf guidance); accumulation and everything else stays f32.
# ---------------------------------------------------------------------------
def reference(x, w_conv, b_conv, w_mask, b_mask, gamma, beta):
    xq = x.astype(jnp.bfloat16).astype(jnp.float32)
    wcq = w_conv.astype(jnp.bfloat16).astype(jnp.float32)
    wmq = w_mask.astype(jnp.bfloat16).astype(jnp.float32)
    xu = jnp.repeat(jnp.repeat(xq, 2, axis=2), 2, axis=3)
    dn = ('NCHW', 'OIHW', 'NCHW')
    conv = lax.conv_general_dilated(xu, wcq, (1, 1), [(1, 1), (1, 1)], dimension_numbers=dn,
                                    precision=lax.Precision.HIGHEST) + b_conv[None, :, None, None]
    mask = lax.conv_general_dilated(xu, wmq, (1, 1), [(1, 1), (1, 1)], dimension_numbers=dn,
                                    precision=lax.Precision.HIGHEST) + b_mask[None, :, None, None]
    act = jnp.where(conv > 0, conv, LEAKY_SLOPE * conv)
    g = act * jax.nn.sigmoid(mask)
    mean = g.mean(axis=(0, 2, 3), keepdims=True)
    var = g.var(axis=(0, 2, 3), keepdims=True)
    return (g - mean) / jnp.sqrt(var + BN_EPS) * gamma[None, :, None, None] \
        + beta[None, :, None, None]


if __name__ == "__main__":
    # Module config: GatedDeConv2dWithActivation(scale_factor=2, in=4, out=8, k=3, stride=1, pad=1)
    N, Cin, H, W = 2, 4, 16, 16
    Cout, KH, KW = 8, 3, 3

    key = jax.random.PRNGKey(0)
    kx, kwc, kwm, kbc, kbm = jax.random.split(key, 5)

    x = jax.random.normal(kx, (N, Cin, H, W), dtype=jnp.float32)

    # Deterministic parameter init (kaiming_normal_ for conv weights, uniform-ish biases).
    fan_in = Cin * KH * KW
    std = (2.0 / fan_in) ** 0.5
    w_conv = jax.random.normal(kwc, (Cout, Cin, KH, KW), dtype=jnp.float32) * std
    w_mask = jax.random.normal(kwm, (Cout, Cin, KH, KW), dtype=jnp.float32) * std
    bound = 1.0 / (fan_in ** 0.5)
    b_conv = jax.random.uniform(kbc, (Cout,), minval=-bound, maxval=bound, dtype=jnp.float32)
    b_mask = jax.random.uniform(kbm, (Cout,), minval=-bound, maxval=bound, dtype=jnp.float32)
    bn_gamma = jnp.ones((Cout,), jnp.float32)
    bn_beta = jnp.zeros((Cout,), jnp.float32)

    fwd = jax.jit(gated_deconv2d)
    out = fwd(x, w_conv, b_conv, w_mask, b_mask, bn_gamma, bn_beta)
    out = jax.block_until_ready(out)

    ref = reference(x, w_conv, b_conv, w_mask, b_mask, bn_gamma, bn_beta)
    assert out.shape == (N, Cout, 2 * H, 2 * W), out.shape
    assert jnp.allclose(out, ref, atol=3e-2, rtol=3e-2), \
        float(jnp.max(jnp.abs(out - ref)))

    print("KERNEL_OK")
</pallas_src>

<mosaic_0001>
module attributes {stable_mosaic.version = 11 : i64} {
  func.func @gated_conv_kernel(%arg0: i32, %arg1: i32, %arg2: memref<1x1x4x728xbf16, #tpu.memory_space<vmem>>, %arg3: memref<16x36xbf16, #tpu.memory_space<vmem>>, %arg4: memref<16x1xf32, #tpu.memory_space<vmem>>, %arg5: memref<1x640xf32, #tpu.memory_space<vmem>>, %arg6: memref<1x8x640xbf16, #tpu.memory_space<vmem>>, %arg7: memref<1x1x8x1xf32, #tpu.memory_space<vmem>>, %arg8: memref<1x1x8x1xf32, #tpu.memory_space<vmem>>, %arg9: memref<36x640xbf16, #tpu.memory_space<vmem>>) attributes {dimension_semantics = [#tpu.dimension_semantics<parallel>, #tpu.dimension_semantics<parallel>], iteration_bounds = array<i64: 2, 2>, scalar_prefetch = 0 : i64, scratch_operands = 1 : i64, tpu.core_type = #tpu.core_type<tc>, window_params = [{transform_indices = @transform_0, window_bounds = array<i64: 1, 1, 4, 728>}, {pipeline_mode = #tpu.pipeline_mode<synchronous>, transform_indices = @transform_1, window_bounds = array<i64: 16, 36>}, {pipeline_mode = #tpu.pipeline_mode<synchronous>, transform_indices = @transform_2, window_bounds = array<i64: 16, 1>}, {pipeline_mode = #tpu.pipeline_mode<synchronous>, transform_indices = @transform_3, window_bounds = array<i64: 1, 640>}, {transform_indices = @transform_4, window_bounds = array<i64: 1, 8, 640>}, {transform_indices = @transform_5, window_bounds = array<i64: 1, 1, 8, 1>}, {transform_indices = @transform_6, window_bounds = array<i64: 1, 1, 8, 1>}]} {
    %c0 = arith.constant 0 : index
    %c0_0 = arith.constant 0 : index
    %c0_1 = arith.constant 0 : index
    %c0_2 = arith.constant 0 : index
    %0 = vector.load %arg2[%c0, %c0_0, %c0_1, %c0_2] : memref<1x1x4x728xbf16, #tpu.memory_space<vmem>>, vector<1x1x4x640xbf16>
    %1 = vector.shape_cast %0 : vector<1x1x4x640xbf16> to vector<4x640xbf16>
    %c0_3 = arith.constant 0 : index
    %c0_4 = arith.constant 0 : index
    %2 = vector.load %arg9[%c0_3, %c0_4] : memref<36x640xbf16, #tpu.memory_space<vmem>>, vector<4x640xbf16>
    tpu.vector_store %arg9[%c0_3, %c0_4], %1 {strides = array<i32>} : memref<36x640xbf16, #tpu.memory_space<vmem>>, vector<4x640xbf16>,
    %c0_5 = arith.constant 0 : index
    %c0_6 = arith.constant 0 : index
    %c0_7 = arith.constant 0 : index
    %c1 = arith.constant 1 : index
    %3 = vector.load %arg2[%c0_5, %c0_6, %c0_7, %c1] : memref<1x1x4x728xbf16, #tpu.memory_space<vmem>>, vector<1x1x4x640xbf16>
    %4 = vector.shape_cast %3 : vector<1x1x4x640xbf16> to vector<4x640xbf16>
    %c4 = arith.constant 4 : index
    %c0_8 = arith.constant 0 : index
    %5 = vector.load %arg9[%c4, %c0_8] : memref<36x640xbf16, #tpu.memory_space<vmem>>, vector<4x640xbf16>
    tpu.vector_store %arg9[%c4, %c0_8], %4 {strides = array<i32>} : memref<36x640xbf16, #tpu.memory_space<vmem>>, vector<4x640xbf16>,
    %c0_9 = arith.constant 0 : index
    %c0_10 = arith.constant 0 : index
    %c0_11 = arith.constant 0 : index
    %c2 = arith.constant 2 : index
    %6 = vector.load %arg2[%c0_9, %c0_10, %c0_11, %c2] : memref<1x1x4x728xbf16, #tpu.memory_space<vmem>>, vector<1x1x4x640xbf16>
    %7 = vector.shape_cast %6 : vector<1x1x4x640xbf16> to vector<4x640xbf16>
    %c8 = arith.constant 8 : index
    %c0_12 = arith.constant 0 : index
    %8 = vector.load %arg9[%c8, %c0_12] : memref<36x640xbf16, #tpu.memory_space<vmem>>, vector<4x640xbf16>
    tpu.vector_store %arg9[%c8, %c0_12], %7 {strides = array<i32>} : memref<36x640xbf16, #tpu.memory_space<vmem>>, vector<4x640xbf16>,
    %c0_13 = arith.constant 0 : index
    %c0_14 = arith.constant 0 : index
    %c0_15 = arith.constant 0 : index
    %c40 = arith.constant 40 : index
    %9 = vector.load %arg2[%c0_13, %c0_14, %c0_15, %c40] : memref<1x1x4x728xbf16, #tpu.memory_space<vmem>>, vector<1x1x4x640xbf16>
    %10 = vector.shape_cast %9 : vector<1x1x4x640xbf16> to vector<4x640xbf16>
    %c12 = arith.constant 12 : index
    %c0_16 = arith.constant 0 : index
    %11 = vector.load %arg9[%c12, %c0_16] : memref<36x640xbf16, #tpu.memory_space<vmem>>, vector<4x640xbf16>
    tpu.vector_store %arg9[%c12, %c0_16], %10 {strides = array<i32>} : memref<36x640xbf16, #tpu.memory_space<vmem>>, vector<4x640xbf16>,
    %c0_17 = arith.constant 0 : index
    %c0_18 = arith.constant 0 : index
    %c0_19 = arith.constant 0 : index
    %c41 = arith.constant 41 : index
    %12 = vector.load %arg2[%c0_17, %c0_18, %c0_19, %c41] : memref<1x1x4x728xbf16, #tpu.memory_space<vmem>>, vector<1x1x4x640xbf16>
    %13 = vector.shape_cast %12 : vector<1x1x4x640xbf16> to vector<4x640xbf16>
    %c16 = arith.constant 16 : index
    %c0_20 = arith.constant 0 : index
    %14 = vector.load %arg9[%c16, %c0_20] : memref<36x640xbf16, #tpu.memory_space<vmem>>, vector<4x640xbf16>
    tpu.vector_store %arg9[%c16, %c0_20], %13 {strides = array<i32>} : memref<36x640xbf16, #tpu.memory_space<vmem>>, vector<4x640xbf16>,
    %c0_21 = arith.constant 0 : index
    %c0_22 = arith.constant 0 : index
    %c0_23 = arith.constant 0 : index
    %c42 = arith.constant 42 : index
    %15 = vector.load %arg2[%c0_21, %c0_22, %c0_23, %c42] : memref<1x1x4x728xbf16, #tpu.memory_space<vmem>>, vector<1x1x4x640xbf16>
    %16 = vector.shape_cast %15 : vector<1x1x4x640xbf16> to vector<4x640xbf16>
    %c20 = arith.constant 20 : index
    %c0_24 = arith.constant 0 : index
    %17 = vector.load %arg9[%c20, %c0_24] : memref<36x640xbf16, #tpu.memory_space<vmem>>, vector<4x640xbf16>
    tpu.vector_store %arg9[%c20, %c0_24], %16 {strides = array<i32>} : memref<36x640xbf16, #tpu.memory_space<vmem>>, vector<4x640xbf16>,
    %c0_25 = arith.constant 0 : index
    %c0_26 = arith.constant 0 : index
    %c0_27 = arith.constant 0 : index
    %c80 = arith.constant 80 : index
    %18 = vector.load %arg2[%c0_25, %c0_26, %c0_27, %c80] : memref<1x1x4x728xbf16, #tpu.memory_space<vmem>>, vector<1x1x4x640xbf16>
    %19 = vector.shape_cast %18 : vector<1x1x4x640xbf16> to vector<4x640xbf16>
    %c24 = arith.constant 24 : index
    %c0_28 = arith.constant 0 : index
    %20 = vector.load %arg9[%c24, %c0_28] : memref<36x640xbf16, #tpu.memory_space<vmem>>, vector<4x640xbf16>
    tpu.vector_store %arg9[%c24, %c0_28], %19 {strides = array<i32>} : memref<36x640xbf16, #tpu.memory_space<vmem>>, vector<4x640xbf16>,
    %c0_29 = arith.constant 0 : index
    %c0_30 = arith.constant 0 : index
    %c0_31 = arith.constant 0 : index
    %c81 = arith.constant 81 : index
    %21 = vector.load %arg2[%c0_29, %c0_30, %c0_31, %c81] : memref<1x1x4x728xbf16, #tpu.memory_space<vmem>>, vector<1x1x4x640xbf16>
    %22 = vector.shape_cast %21 : vector<1x1x4x640xbf16> to vector<4x640xbf16>
    %c28 = arith.constant 28 : index
    %c0_32 = arith.constant 0 : index
    %23 = vector.load %arg9[%c28, %c0_32] : memref<36x640xbf16, #tpu.memory_space<vmem>>, vector<4x640xbf16>
    tpu.vector_store %arg9[%c28, %c0_32], %22 {strides = array<i32>} : memref<36x640xbf16, #tpu.memory_space<vmem>>, vector<4x640xbf16>,
    %c0_33 = arith.constant 0 : index
    %c0_34 = arith.constant 0 : index
    %c0_35 = arith.constant 0 : index
    %c82 = arith.constant 82 : index
    %24 = vector.load %arg2[%c0_33, %c0_34, %c0_35, %c82] : memref<1x1x4x728xbf16, #tpu.memory_space<vmem>>, vector<1x1x4x640xbf16>
    %25 = vector.shape_cast %24 : vector<1x1x4x640xbf16> to vector<4x640xbf16>
    %c32 = arith.constant 32 : index
    %c0_36 = arith.constant 0 : index
    %26 = vector.load %arg9[%c32, %c0_36] : memref<36x640xbf16, #tpu.memory_space<vmem>>, vector<4x640xbf16>
    tpu.vector_store %arg9[%c32, %c0_36], %25 {strides = array<i32>} : memref<36x640xbf16, #tpu.memory_space<vmem>>, vector<4x640xbf16>,
    %c0_37 = arith.constant 0 : index
    %c0_38 = arith.constant 0 : index
    %27 = vector.load %arg3[%c0_37, %c0_38] : memref<16x36xbf16, #tpu.memory_space<vmem>>, vector<16x36xbf16>
    %c0_39 = arith.constant 0 : index
    %c0_40 = arith.constant 0 : index
    %28 = vector.load %arg9[%c0_39, %c0_40] : memref<36x640xbf16, #tpu.memory_space<vmem>>, vector<36x640xbf16>
    %cst = arith.constant dense<0.000000e+00> : vector<16x640xf32>
    %29 = tpu.matmul %27, %28, %cst {dimension_numbers = #tpu.dot_dimension_numbers<[1], [0], [0], [1], [0, 0, 1, 1], [], []>} : vector<16x36xbf16>, vector<36x640xbf16>, vector<16x640xf32> -> vector<16x640xf32>
    %c0_41 = arith.constant 0 : index
    %c0_42 = arith.constant 0 : index
    %30 = vector.load %arg4[%c0_41, %c0_42] : memref<16x1xf32, #tpu.memory_space<vmem>>, vector<16x1xf32>
    %31 = vector.broadcast %30 : vector<16x1xf32> to vector<16x640xf32>
    %32 = arith.addf %29, %31 : vector<16x640xf32>
    %33 = vector.extract_strided_slice %32 {offsets = [0, 0], sizes = [8, 640], strides = [1, 1]} : vector<16x640xf32> to vector<8x640xf32>
    %34 = vector.extract_strided_slice %32 {offsets = [8, 0], sizes = [8, 640], strides = [1, 1]} : vector<16x640xf32> to vector<8x640xf32>
    %cst_43 = arith.constant 0.000000e+00 : f32
    %35 = vector.broadcast %cst_43 : f32 to vector<8x640xf32>
    %36 = arith.cmpf ogt, %33, %35 : vector<8x640xf32>
    %cst_44 = arith.constant 2.000000e-01 : f32
    %37 = vector.broadcast %cst_44 : f32 to vector<8x640xf32>
    %38 = arith.mulf %37, %33 : vector<8x640xf32>
    %39 = arith.select %36, %33, %38 : vector<8x640xi1>, vector<8x640xf32>
    %40 = arith.negf %34 : vector<8x640xf32>
    %41 = math.exp %40 : vector<8x640xf32>
    %cst_45 = arith.constant 1.000000e+00 : f32
    %42 = vector.broadcast %cst_45 : f32 to vector<8x640xf32>
    %43 = arith.addf %42, %41 : vector<8x640xf32>
    %44 = arith.divf %42, %43 : vector<8x640xf32>
    %45 = arith.mulf %39, %44 : vector<8x640xf32>
    %c0_46 = arith.constant 0 : index
    %c0_47 = arith.constant 0 : index
    %46 = vector.load %arg5[%c0_46, %c0_47] : memref<1x640xf32, #tpu.memory_space<vmem>>, vector<1x640xf32>
    %47 = vector.broadcast %46 : vector<1x640xf32> to vector<8x640xf32>
    %48 = arith.mulf %45, %47 : vector<8x640xf32>
    %cst_48 = arith.constant dense<0.000000e+00> : vector<8xf32>
    %49 = vector.multi_reduction <add>, %48, %cst_48 [1] : vector<8x640xf32> to vector<8xf32>
    %50 = vector.shape_cast %49 : vector<8xf32> to vector<8x1xf32>
    %c0_49 = arith.constant 0 : index
    %c0_50 = arith.constant 0 : index
    %c0_51 = arith.constant 0 : index
    %c0_52 = arith.constant 0 : index
    %51 = vector.load %arg7[%c0_49, %c0_50, %c0_51, %c0_52] : memref<1x1x8x1xf32, #tpu.memory_space<vmem>>, vector<1x1x8x1xf32>
    %52 = vector.shape_cast %51 : vector<1x1x8x1xf32> to vector<8x1xf32>
    %53 = vector.shape_cast %50 : vector<8x1xf32> to vector<1x1x8x1xf32>
    tpu.vector_store %arg7[%c0_49, %c0_50, %c0_51, %c0_52], %53 {strides = array<i32>} : memref<1x1x8x1xf32, #tpu.memory_space<vmem>>, vector<1x1x8x1xf32>,
    %54 = arith.mulf %48, %48 : vector<8x640xf32>
    %cst_53 = arith.constant dense<0.000000e+00> : vector<8xf32>
    %55 = vector.multi_reduction <add>, %54, %cst_53 [1] : vector<8x640xf32> to vector<8xf32>
    %56 = vector.shape_cast %55 : vector<8xf32> to vector<8x1xf32>
    %c0_54 = arith.constant 0 : index
    %c0_55 = arith.constant 0 : index
    %c0_56 = arith.constant 0 : index
    %c0_57 = arith.constant 0 : index
    %57 = vector.load %arg8[%c0_54, %c0_55, %c0_56, %c0_57] : memref<1x1x8x1xf32, #tpu.memory_space<vmem>>, vector<1x1x8x1xf32>
    %58 = vector.shape_cast %57 : vector<1x1x8x1xf32> to vector<8x1xf32>
    %59 = vector.shape_cast %56 : vector<8x1xf32> to vector<1x1x8x1xf32>
    tpu.vector_store %arg8[%c0_54, %c0_55, %c0_56, %c0_57], %59 {strides = array<i32>} : memref<1x1x8x1xf32, #tpu.memory_space<vmem>>, vector<1x1x8x1xf32>,
    %60 = arith.truncf %45 : vector<8x640xf32> to vector<8x640xbf16>
    %c0_58 = arith.constant 0 : index
    %c0_59 = arith.constant 0 : index
    %c0_60 = arith.constant 0 : index
    %61 = vector.load %arg6[%c0_58, %c0_59, %c0_60] : memref<1x8x640xbf16, #tpu.memory_space<vmem>>, vector<1x8x640xbf16>
    %62 = vector.shape_cast %61 : vector<1x8x640xbf16> to vector<8x640xbf16>
    %63 = vector.shape_cast %60 : vector<8x640xbf16> to vector<1x8x640xbf16>
    tpu.vector_store %arg6[%c0_58, %c0_59, %c0_60], %63 {strides = array<i32>} : memref<1x8x640xbf16, #tpu.memory_space<vmem>>, vector<1x8x640xbf16>,
    return
  }
  func.func @transform_0(%arg0: i32, %arg1: i32) -> (i32, i32, i32, i32) {
    %c0_i32 = arith.constant 0 : i32
    %c0_i32_0 = arith.constant 0 : i32
    %c0_i32_1 = arith.constant 0 : i32
    return %arg0, %arg1, %c0_i32, %c0_i32_0 : i32, i32, i32, i32
  }
  func.func @transform_1(%arg0: i32, %arg1: i32) -> (i32, i32) {
    %c0_i32 = arith.constant 0 : i32
    %c0_i32_0 = arith.constant 0 : i32
    %c0_i32_1 = arith.constant 0 : i32
    return %c0_i32, %c0_i32_0 : i32, i32
  }
  func.func @transform_2(%arg0: i32, %arg1: i32) -> (i32, i32) {
    %c0_i32 = arith.constant 0 : i32
    %c0_i32_0 = arith.constant 0 : i32
    %c0_i32_1 = arith.constant 0 : i32
    return %c0_i32, %c0_i32_0 : i32, i32
  }
  func.func @transform_3(%arg0: i32, %arg1: i32) -> (i32, i32) {
    %c0_i32 = arith.constant 0 : i32
    %c0_i32_0 = arith.constant 0 : i32
    %c0_i32_1 = arith.constant 0 : i32
    return %c0_i32, %c0_i32_0 : i32, i32
  }
  func.func @transform_4(%arg0: i32, %arg1: i32) -> (i32, i32, i32) {
    %c0_i32 = arith.constant 0 : i32
    %c0_i32_0 = arith.constant 0 : i32
    return %arg0, %c0_i32, %arg1 : i32, i32, i32
  }
  func.func @transform_5(%arg0: i32, %arg1: i32) -> (i32, i32, i32, i32) {
    %c0_i32 = arith.constant 0 : i32
    %c0_i32_0 = arith.constant 0 : i32
    %c0_i32_1 = arith.constant 0 : i32
    return %arg0, %arg1, %c0_i32, %c0_i32_0 : i32, i32, i32, i32
  }
  func.func @transform_6(%arg0: i32, %arg1: i32) -> (i32, i32, i32, i32) {
    %c0_i32 = arith.constant 0 : i32
    %c0_i32_0 = arith.constant 0 : i32
    %c0_i32_1 = arith.constant 0 : i32
    return %arg0, %arg1, %c0_i32, %c0_i32_0 : i32, i32, i32, i32
  }
}

module attributes {stable_mosaic.version = 11 : i64} {
  func.func @bn_apply_kernel(%arg0: i32, %arg1: i32, %arg2: memref<1x8x16x40xbf16, #tpu.memory_space<vmem>>, %arg3: memref<8x1x1xf32, #tpu.memory_space<vmem>>, %arg4: memref<8x1x1xf32, #tpu.memory_space<vmem>>, %arg5: memref<1x8x16x32xf32, #tpu.memory_space<vmem>>) attributes {dimension_semantics = [#tpu.dimension_semantics<parallel>, #tpu.dimension_semantics<parallel>], iteration_bounds = array<i64: 2, 2>, scalar_prefetch = 0 : i64, scratch_operands = 0 : i64, tpu.core_type = #tpu.core_type<tc>, window_params = [{transform_indices = @transform_0, window_bounds = array<i64: 1, 8, 16, 40>}, {pipeline_mode = #tpu.pipeline_mode<synchronous>, transform_indices = @transform_1, window_bounds = array<i64: 8, 1, 1>}, {pipeline_mode = #tpu.pipeline_mode<synchronous>, transform_indices = @transform_2, window_bounds = array<i64: 8, 1, 1>}, {transform_indices = @transform_3, window_bounds = array<i64: 1, 8, 16, 32>}]} {
    %c0 = arith.constant 0 : index
    %c0_0 = arith.constant 0 : index
    %c0_1 = arith.constant 0 : index
    %c0_2 = arith.constant 0 : index
    %0 = vector.load %arg2[%c0, %c0_0, %c0_1, %c0_2] : memref<1x8x16x40xbf16, #tpu.memory_space<vmem>>, vector<1x8x16x32xbf16>
    %1 = vector.shape_cast %0 : vector<1x8x16x32xbf16> to vector<8x16x32xbf16>
    %2 = arith.extf %1 : vector<8x16x32xbf16> to vector<8x16x32xf32>
    %c0_3 = arith.constant 0 : index
    %c0_4 = arith.constant 0 : index
    %c0_5 = arith.constant 0 : index
    %3 = vector.load %arg3[%c0_3, %c0_4, %c0_5] : memref<8x1x1xf32, #tpu.memory_space<vmem>>, vector<8x1x1xf32>
    %4 = vector.broadcast %3 : vector<8x1x1xf32> to vector<8x16x32xf32>
    %5 = arith.mulf %2, %4 : vector<8x16x32xf32>
    %c0_6 = arith.constant 0 : index
    %c0_7 = arith.constant 0 : index
    %c0_8 = arith.constant 0 : index
    %6 = vector.load %arg4[%c0_6, %c0_7, %c0_8] : memref<8x1x1xf32, #tpu.memory_space<vmem>>, vector<8x1x1xf32>
    %7 = vector.broadcast %6 : vector<8x1x1xf32> to vector<8x16x32xf32>
    %8 = arith.addf %5, %7 : vector<8x16x32xf32>
    %c0_9 = arith.constant 0 : index
    %c0_10 = arith.constant 0 : index
    %c0_11 = arith.constant 0 : index
    %c0_12 = arith.constant 0 : index
    %9 = vector.load %arg5[%c0_9, %c0_10, %c0_11, %c0_12] : memref<1x8x16x32xf32, #tpu.memory_space<vmem>>, vector<1x8x16x32xf32>
    %10 = vector.shape_cast %9 : vector<1x8x16x32xf32> to vector<8x16x32xf32>
    %11 = vector.shape_cast %8 : vector<8x16x32xf32> to vector<1x8x16x32xf32>
    tpu.vector_store %arg5[%c0_9, %c0_10, %c0_11, %c0_12], %11 {strides = array<i32>} : memref<1x8x16x32xf32, #tpu.memory_space<vmem>>, vector<1x8x16x32xf32>,
    return
  }
  func.func @transform_0(%arg0: i32, %arg1: i32) -> (i32, i32, i32, i32) {
    %c0_i32 = arith.constant 0 : i32
    %c0_i32_0 = arith.constant 0 : i32
    %c0_i32_1 = arith.constant 0 : i32
    return %arg0, %c0_i32, %arg1, %c0_i32_0 : i32, i32, i32, i32
  }
  func.func @transform_1(%arg0: i32, %arg1: i32) -> (i32, i32, i32) {
    %c0_i32 = arith.constant 0 : i32
    %c0_i32_0 = arith.constant 0 : i32
    %c0_i32_1 = arith.constant 0 : i32
    %c0_i32_2 = arith.constant 0 : i32
    return %c0_i32, %c0_i32_0, %c0_i32_1 : i32, i32, i32
  }
  func.func @transform_2(%arg0: i32, %arg1: i32) -> (i32, i32, i32) {
    %c0_i32 = arith.constant 0 : i32
    %c0_i32_0 = arith.constant 0 : i32
    %c0_i32_1 = arith.constant 0 : i32
    %c0_i32_2 = arith.constant 0 : i32
    return %c0_i32, %c0_i32_0, %c0_i32_1 : i32, i32, i32
  }
  func.func @transform_3(%arg0: i32, %arg1: i32) -> (i32, i32, i32, i32) {
    %c0_i32 = arith.constant 0 : i32
    %c0_i32_0 = arith.constant 0 : i32
    %c0_i32_1 = arith.constant 0 : i32
    return %arg0, %c0_i32, %arg1, %c0_i32_0 : i32, i32, i32, i32
  }
}

</mosaic_0001>

<llo_original>
// kernel: tile.8
$region0: #{tile.8}
  #allocation0 [shape = 's32[1]{0}', space=sflag, size = 0x4, scoped, tag = 'scoped memory for tile.8']
  %s0 = inlined_call_operand.vmem [shape: f32[40], index: 0, kind: input, shape index: {}]
  %s1 = inlined_call_operand.vmem [shape: f32[16,40], index: 1, kind: output, shape index: {}]
  // Predicated region
  $region2: #{tile.8} parent=0 // pred_check
    _
  $region3: #{tile.8} parent=0 // pred_check_branch
    %3 = sbr.rel (0) target = $region5
  $region4: #{tile.8} parent=0 // pred_region
    _
  $region5: #{tile.8} parent=0 // pred_fallthru
    _
  %v4 = vld [vmem:[%s0] ss:$0 sm:$0xff]
  %5 = vst [vmem:[%s1] sm:$0xff] %v4
  %s6 = scalar_lea.vmem %s1, 8
  %7 = vst [vmem:[%s6] sm:$0xff] %v4

// kernel: tile.9
$region0: #{tile.9}
  %s0 = inlined_call_operand.vmem [shape: f32[16,40], index: 0, kind: input, shape index: {}]
  %s1 = inlined_call_operand.vmem [shape: f32[1,640], index: 1, kind: output, shape index: {}]
  $region1: #{tile.9} parent=0
    #allocation0 [shape = 'u8[20480]{0}', space=vmem, size = 0x5000, scoped, tag = 'scoped mem for output reshape']
    %v2 = vld [vmem:[%s0] sm:$0x1]
    %vm3 = vcmask 326656
    %4 = vst.msk [vmem:[#allocation0] sm:$0x1] %vm3, %v2
    %s5 = scalar_lea.vmem %s0, 3
    %v6 = vld [vmem:[%s5] sm:$0x1]
    %s7 = scalar_lea.vmem %s0, 3
    %v8 = vld [vmem:[%s7] sm:$0x1]
    %vm9 = vcmask 64512
    %v10 = vsel %vm9, %v8, %v6
    %11 = vrot.lane.b32.xlu0 %v10, 120
    %v12 = vpop.permute.xlu0 %11
    %vm13 = vcmask 261120
    %s14 = scalar_lea.vmem [#allocation0], 8
    %15 = vst.msk [vmem:[%s14] sm:$0x1] %vm13, %v12
    %vm16 = vcmask 1048512
    %17 = vst.msk [vmem:[#allocation0] sm:$0x1] %vm16, %v12
    %s18 = scalar_lea.vmem %s0, 6
    %v19 = vld [vmem:[%s18] sm:$0x1]
    %s20 = scalar_lea.vmem %s0, 6
    %v21 = vld [vmem:[%s20] sm:$0x1]
    %vm22 = vcmask 130048
    %v23 = vsel %vm22, %v21, %v19
    %24 = vrot.lane.b32.xlu0 %v23, 112
    %v25 = vpop.permute.xlu0 %24
    %vm26 = vcmask 195584
    %s27 = scalar_lea.vmem [#allocation0], 16
    %28 = vst.msk [vmem:[%s27] sm:$0x1] %vm26, %v25
    %vm29 = vcmask 1048448
    %s30 = scalar_lea.vmem [#allocation0], 8
    %31 = vst.msk [vmem:[%s30] sm:$0x1] %vm29, %v25
    %s32 = scalar_lea.vmem %s0, 9
    %v33 = vld [vmem:[%s32] sm:$0x1]
    %s34 = scalar_lea.vmem %s0, 9
    %v35 = vld [vmem:[%s34] sm:$0x1]
    %vm36 = vcmask 195584
    %v37 = vsel %vm36, %v35, %v33
    %38 = vrot.lane.b32.xlu0 %v37, 104
    %v39 = vpop.permute.xlu0 %38
    %vm40 = vcmask 130048
    %s41 = scalar_lea.vmem [#allocation0], 24
    %42 = vst.msk [vmem:[%s41] sm:$0x1] %vm40, %v39
    %vm43 = vcmask 1048384
    %s44 = scalar_lea.vmem [#allocation0], 16
    %45 = vst.msk [vmem:[%s44] sm:$0x1] %vm43, %v39
    %s46 = scalar_lea.vmem %s0, 12
    %v47 = vld [vmem:[%s46] sm:$0x1]
    %s48 = scalar_lea.vmem %s0, 12
    %v49 = vld [vmem:[%s48] sm:$0x1]
    %vm50 = vcmask 261120
    %v51 = vsel %vm50, %v49, %v47
    %52 = vrot.lane.b32.xlu0 %v51, 96
    %v53 = vpop.permute.xlu0 %52
    %vm54 = vcmask 64512
    %s55 = scalar_lea.vmem [#allocation0], 32
    %56 = vst.msk [vmem:[%s55] sm:$0x1] %vm54, %v53
    %vm57 = vcmask 1048320
    %s58 = scalar_lea.vmem [#allocation0], 24
    %59 = vst.msk [vmem:[%s58] sm:$0x1] %vm57, %v53
    %s60 = scalar_lea.vmem %s0, 15
    %v61 = vld [vmem:[%s60] sm:$0x1]
    %62 = vrot.lane.b32.xlu0 %v61, 88
    %v63 = vpop.permute.xlu0 %62
    %vm64 = vcmask 1048256
    %s65 = scalar_lea.vmem [#allocation0], 32
    %66 = vst.msk [vmem:[%s65] sm:$0x1] %vm64, %v63
    %s67 = scalar_lea.vmem %s0, 2
    %v68 = vld [vmem:[%s67] sm:$0x1]
    %69 = vrot.lane.b32.xlu0 %v68, 80
    %v70 = vpop.permute.xlu0 %69
    %vm71 = vcmask 982656
    %72 = vst.msk [vmem:[#allocation0] sm:$0x1] %vm71, %v70
    %s73 = scalar_lea.vmem %s0, 5
    %v74 = vld [vmem:[%s73] sm:$0x1]
    %75 = vrot.lane.b32.xlu0 %v74, 72
    %v76 = vpop.permute.xlu0 %75
    %vm77 = vcmask 917056
    %s78 = scalar_lea.vmem [#allocation0], 8
    %79 = vst.msk [vmem:[%s78] sm:$0x1] %vm77, %v76
    %s80 = scalar_lea.vmem %s0, 8
    %v81 = vld [vmem:[%s80] sm:$0x1]
    %82 = vrot.lane.b32.xlu0 %v81, 64
    %v83 = vpop.permute.xlu0 %82
    %vm84 = vcmask 851456
    %s85 = scalar_lea.vmem [#allocation0], 16
    %86 = vst.msk [vmem:[%s85] sm:$0x1] %vm84, %v83
    %s87 = scalar_lea.vmem %s0, 11
    %v88 = vld [vmem:[%s87] sm:$0x1]
    %89 = vrot.lane.b32.xlu0 %v88, 56
    %v90 = vpop.permute.xlu0 %89
    %vm91 = vcmask 785856
    %s92 = scalar_lea.vmem [#allocation0], 24
    %93 = vst.msk [vmem:[%s92] sm:$0x1] %vm91, %v90
    %s94 = scalar_lea.vmem %s0, 14
    %v95 = vld [vmem:[%s94] sm:$0x1]
    %96 = vrot.lane.b32.xlu0 %v95, 48
    %v97 = vpop.permute.xlu0 %96
    %vm98 = vcmask 720256
    %s99 = scalar_lea.vmem [#allocation0], 32
    %100 = vst.msk [vmem:[%s99] sm:$0x1] %vm98, %v97
    %s101 = scalar_lea.vmem %s0, 1
    %v102 = vld [vmem:[%s101] sm:$0x1]
    %103 = vrot.lane.b32.xlu0 %v102, 40
    %v104 = vpop.permute.xlu0 %103
    %vm105 = vcmask 654656
    %106 = vst.msk [vmem:[#allocation0] sm:$0x1] %vm105, %v104
    %s107 = scalar_lea.vmem %s0, 4
    %v108 = vld [vmem:[%s107] sm:$0x1]
    %109 = vrot.lane.b32.xlu0 %v108, 32
    %v110 = vpop.permute.xlu0 %109
    %vm111 = vcmask 589056
    %s112 = scalar_lea.vmem [#allocation0], 8
    %113 = vst.msk [vmem:[%s112] sm:$0x1] %vm111, %v110
    %s114 = scalar_lea.vmem %s0, 7
    %v115 = vld [vmem:[%s114] sm:$0x1]
    %116 = vrot.lane.b32.xlu0 %v115, 24
    %v117 = vpop.permute.xlu0 %116
    %vm118 = vcmask 523456
    %s119 = scalar_lea.vmem [#allocation0], 16
    %120 = vst.msk [vmem:[%s119] sm:$0x1] %vm118, %v117
    %s121 = scalar_lea.vmem %s0, 10
    %v122 = vld [vmem:[%s121] sm:$0x1]
    %123 = vrot.lane.b32.xlu0 %v122, 16
    %v124 = vpop.permute.xlu0 %123
    %vm125 = vcmask 457856
    %s126 = scalar_lea.vmem [#allocation0], 24
    %127 = vst.msk [vmem:[%s126] sm:$0x1] %vm125, %v124
    %s128 = scalar_lea.vmem %s0, 13
    %v129 = vld [vmem:[%s128] sm:$0x1]
    %130 = vrot.lane.b32.xlu0 %v129, 8
    %v131 = vpop.permute.xlu0 %130
    %vm132 = vcmask 392256
    %s133 = scalar_lea.vmem [#allocation0], 32
    %134 = vst.msk [vmem:[%s133] sm:$0x1] %vm132, %v131
    %s136 = sshll.u32 1, 1
    %s137 = ssub.s32 %s136, 1
    %v139 = vld [vmem:[#allocation0] sm:%s137]
    %s140 = sshll.u32 1, 1
    %s141 = ssub.s32 %s140, 1
    %142 = vst [vmem:[%s1] sm:%s141] %v139
    %s143 = scalar_lea.vmem [#allocation0], 8
    %v144 = vld [vmem:[%s143] sm:%s137]
    %s145 = sshll.u32 1, 1
    %s146 = ssub.s32 %s145, 1
    %s147 = scalar_lea.vmem %s1, 1
    %148 = vst [vmem:[%s147] sm:%s146] %v144
    %s149 = scalar_lea.vmem [#allocation0], 16
    %v150 = vld [vmem:[%s149] sm:%s137]
    %s151 = sshll.u32 1, 1
    %s152 = ssub.s32 %s151, 1
    %s153 = smul.addr 1, 2
    %s154 = scalar_lea.vmem %s1, %s153
    %155 = vst [vmem:[%s154] sm:%s152] %v150
    %s156 = scalar_lea.vmem [#allocation0], 24
    %v157 = vld [vmem:[%s156] sm:%s137]
    %s158 = sshll.u32 1, 1
    %s159 = ssub.s32 %s158, 1
    %s160 = smul.addr 1, 3
    %s161 = scalar_lea.vmem %s1, %s160
    %162 = vst [vmem:[%s161] sm:%s159] %v157
    %s163 = scalar_lea.vmem [#allocation0], 32
    %v164 = vld [vmem:[%s163] sm:%s137]
    %s165 = sshll.u32 1, 1
    %s166 = ssub.s32 %s165, 1
    %s167 = smul.addr 1, 4
    %s168 = scalar_lea.vmem %s1, %s167
    %169 = vst [vmem:[%s168] sm:%s166] %v164

// kernel: gated_deconv2d.3
$region0: #{gated_deconv2d.3}
  #allocation0 [shape = 'u32[]', space=smem, size = 0x4, offset = 0x4, fixed_abs, tag = 'smem constant byte address 0x4 - core index']
  #allocation1 [shape = 'u32[144,128]{1,0:T(1,128)}', space=vmem, size = 0x12000, scoped, tag = 'internal scratch']
  #allocation5 [shape = 's32[]', space=sflag, size = 0x4, offset = 0, fixed_abs, tag = 'sflag constant byte address 0x0 - dummy sync flag']
  %s0 = inlined_call_operand.vmem [shape: bf16[2,8,32,40], index: 0, kind: input, shape index: {}]
  %s1 = inlined_call_operand.vmem [shape: f32[8,1,1], index: 1, kind: input, shape index: {}]
  %s2 = inlined_call_operand.vmem [shape: f32[8,1,1], index: 2, kind: input, shape index: {}]
  %s3 = inlined_call_operand.hbm [shape: f32[2,8,32,32], index: 3, kind: output, shape index: {}]
  %s4 = sld [smem:[#allocation0]]
  $region86: #{gated_deconv2d.3} parent=0
    _
  %s6 = ssub.s32 1, %s4
  %s7 = scalar_select 0, %s6, %s4
  $region1: #{gated_deconv2d.3} parent=0
    #allocation2 [shape = 'u8[65536]{0}', space=vmem, size = 0x10000, scoped, tag = 'input window, operand 0']
    #allocation3 [shape = 'u8[131072]{0}', space=vmem, size = 0x20000, scoped, tag = 'output window, operand 0']
    #allocation4 [shape = 's32[2]{0}', space=sflag, size = 0x8, scoped, tag = 'scoped memory for gated_deconv2d.3']
    %8 = vsyncpa [#allocation4], 0
    %s9 = scalar_lea.sflag [#allocation4], 1
    %10 = vsyncpa %s9, 0
    loop: start=0, step=1, limit=6
    $region2: #{gated_deconv2d.3} parent=1 // loop_pre_header
      _
    $region3: #{gated_deconv2d.3} parent=1 // loop_header
      %s12 = sphi 0, %s16
      %p13 = scmp.ge.s32.totalorder %s12, 6
      %s19 = sphi 0, %s31
      %s20 = sphi 0, %s27
      %s21 = sphi 0, %s19
      %s22 = sphi 0, %s20
      %s23 = sphi 0, %s21
      %s24 = sphi 0, %s22
      %s36 = sphi 0, %s38
      %s39 = sphi 0, %s36
      %s40 = sphi 0, %s39
      %s56 = sphi 0, %s40
      %s60 = sphi 0, %s60
      %s62 = sphi 0, %s60
      %s63 = sphi 0, %s62
      %s77 = sphi 0, %s63
      %s81 = sphi 0, %s81
      %s83 = sphi 0, %s81
      %s84 = sphi 0, %s83
      %s98 = sphi 0, %s84
      %s106 = sphi 0, %s108
      %s109 = sphi 0, %s106
      %s110 = sphi 0, %s109
      %s126 = sphi 0, %s110
    $region4: #{gated_deconv2d.3} parent=1 // loop_header_branch
      %15 = sbr.rel (%p13) target = $region8
    $region5: #{gated_deconv2d.3} parent=1 // loop_body
      %s17 = ssub.s32 %s12, 1
      %s18 = ssub.s32 %s12, 2
      %s25 = sadd.s32 1, %s20
      %p26 = scmp.ge.s32.totalorder %s25, 2
      %s27 = scalar_select %p26, 0, %s25
      %s28 = sadd.s32 1, %s19
      %s29 = scalar_select %p26, %s28, %s19
      %p30 = scmp.ge.s32.totalorder %s29, 2
      %s31 = scalar_select %p30, 0, %s29
      %s32 = ssub.s32 %s19, %s31
      %s33 = ssub.s32 %s20, %s27
      %s34 = sor.u32 %s32, %s33
      %p35 = scmp.eq.s32.totalorder %s34, 0
      %s37 = sadd.s32 %s36, 1
      %s38 = scalar_select %p35, %s36, %s37
      %p41 = pneg %p35
      %p42 = scmp.eq.s32.totalorder %s12, 3
      %p43 = por %p41, %p42
      %p44 = scmp.ne.s32.totalorder %s36, %s39
      %p45 = scmp.eq.s32.totalorder %s12, 0
      %p46 = por %p44, %p45
      %p47 = scmp.ne.s32.totalorder %s36, %s39
      %p48 = scmp.eq.s32.totalorder %s17, 3
      %p49 = por %p47, %p48
      %p50 = scmp.ne.s32.totalorder %s39, %s40
      %p51 = scmp.eq.s32.totalorder %s17, 0
      %p52 = por %p50, %p51
      %p53 = scmp.ne.s32.totalorder %s39, %s40
      %p54 = scmp.eq.s32.totalorder %s18, 3
      %p55 = por %p53, %p54
      %p57 = scmp.ne.s32.totalorder %s40, %s56
      %p58 = scmp.eq.s32.totalorder %s18, 0
      %p59 = por %p57, %p58
      %s61 = sadd.s32 %s60, 1
      %p64 = scmp.eq.s32.totalorder %s12, 3
      %p65 = scmp.ne.s32.totalorder %s60, %s62
      %p66 = scmp.eq.s32.totalorder %s12, 0
      %p67 = por %p65, %p66
      %p68 = scmp.ne.s32.totalorder %s60, %s62
      %p69 = scmp.eq.s32.totalorder %s17, 3
      %p70 = por %p68, %p69
      %p71 = scmp.ne.s32.totalorder %s62, %s63
      %p72 = scmp.eq.s32.totalorder %s17, 0
      %p73 = por %p71, %p72
      %p74 = scmp.ne.s32.totalorder %s62, %s63
      %p75 = scmp.eq.s32.totalorder %s18, 3
      %p76 = por %p74, %p75
      %p78 = scmp.ne.s32.totalorder %s63, %s77
      %p79 = scmp.eq.s32.totalorder %s18, 0
      %p80 = por %p78, %p79
      %s82 = sadd.s32 %s81, 1
      %p85 = scmp.eq.s32.totalorder %s12, 3
      %p86 = scmp.ne.s32.totalorder %s81, %s83
      %p87 = scmp.eq.s32.totalorder %s12, 0
      %p88 = por %p86, %p87
      %p89 = scmp.ne.s32.totalorder %s81, %s83
      %p90 = scmp.eq.s32.totalorder %s17, 3
      %p91 = por %p89, %p90
      %p92 = scmp.ne.s32.totalorder %s83, %s84
      %p93 = scmp.eq.s32.totalorder %s17, 0
      %p94 = por %p92, %p93
      %p95 = scmp.ne.s32.totalorder %s83, %s84
      %p96 = scmp.eq.s32.totalorder %s18, 3
      %p97 = por %p95, %p96
      %p99 = scmp.ne.s32.totalorder %s84, %s98
      %p100 = scmp.eq.s32.totalorder %s18, 0
      %p101 = por %p99, %p100
      %s102 = ssub.s32 %s19, %s31
      %s103 = ssub.s32 %s20, %s27
      %s104 = sor.u32 %s102, %s103
      %p105 = scmp.eq.s32.totalorder %s104, 0
      %s107 = sadd.s32 %s106, 1
      %s108 = scalar_select %p105, %s106, %s107
      %p111 = pneg %p105
      %p112 = scmp.eq.s32.totalorder %s12, 3
      %p113 = por %p111, %p112
      %p114 = scmp.ne.s32.totalorder %s106, %s109
      %p115 = scmp.eq.s32.totalorder %s12, 0
      %p116 = por %p114, %p115
      %p117 = scmp.ne.s32.totalorder %s106, %s109
      %p118 = scmp.eq.s32.totalorder %s17, 3
      %p119 = por %p117, %p118
      %p120 = scmp.ne.s32.totalorder %s109, %s110
      %p121 = scmp.eq.s32.totalorder %s17, 0
      %p122 = por %p120, %p121
      %p123 = scmp.ne.s32.totalorder %s109, %s110
      %p124 = scmp.eq.s32.totalorder %s18, 3
      %p125 = por %p123, %p124
      %p127 = scmp.ne.s32.totalorder %s110, %s126
      %p128 = scmp.eq.s32.totalorder %s18, 0
      %p129 = por %p127, %p128
      %p130 = scmp.le.s32.totalorder 1, %s12
      %p131 = scmp.lt.s32.totalorder %s12, 5
      %p132 = pnand %p130, %p131
      %p133 = pneg %p132
      // Predicated region
      $region9: #{gated_deconv2d.3} parent=5 // pred_check
        _
      $region10: #{gated_deconv2d.3} parent=5 // pred_check_branch
        %135 = sbr.rel (%p132) target = $region12
      $region11: #{gated_deconv2d.3} parent=5 // pred_region
        %s136 = ssub.s32 %s12, 1
        // Predicated region
        $region13: #{gated_deconv2d.3} parent=11 // pred_check
          %p137 = pneg %p73
        $region14: #{gated_deconv2d.3} parent=11 // pred_check_branch
          %139 = sbr.rel (%p137) target = $region16
        $region15: #{gated_deconv2d.3} parent=11 // pred_region
          _
        $region16: #{gated_deconv2d.3} parent=11 // pred_fallthru
          _
        // Predicated region
        $region17: #{gated_deconv2d.3} parent=11 // pred_check
          %p140 = pneg %p94
        $region18: #{gated_deconv2d.3} parent=11 // pred_check_branch
          %142 = sbr.rel (%p140) target = $region20
        $region19: #{gated_deconv2d.3} parent=11 // pred_region
          _
        $region20: #{gated_deconv2d.3} parent=11 // pred_fallthru
          _
      $region12: #{gated_deconv2d.3} parent=5 // pred_fallthru
        _
      %p143 = scmp.lt.s32.totalorder %s12, 4
      // Predicated region
      $region21: #{gated_deconv2d.3} parent=5 // pred_check
        %p144 = pneg %p143
      $region22: #{gated_deconv2d.3} parent=5 // pred_check_branch
        %146 = sbr.rel (%p144) target = $region24
      $region23: #{gated_deconv2d.3} parent=5 // pred_region
        // Predicated region
        $region25: #{gated_deconv2d.3} parent=23 // pred_check
          %p147 = pneg %p46
        $region26: #{gated_deconv2d.3} parent=23 // pred_check_branch
          %149 = sbr.rel (%p147) target = $region28
        $region27: #{gated_deconv2d.3} parent=23 // pred_region
          %s150 = sand.u32 %s36, 1
          %s151 = sand.u32 %s36, 1
          %s152 = smul.addr %s151, 64
          %s153 = scalar_lea.vmem [#allocation2], %s152
          %s154 = smul.u32 2, %s20
          %s155 = smul.addr %s19, 32
          %s156 = sadd.s32 %s154, %s155
          %s157 = smul.addr %s156, 4
          %s158 = scalar_lea.vmem %s0, %s157
          // Predicated region
          $region29: #{gated_deconv2d.3} parent=27 // pred_check
            _
          $region30: #{gated_deconv2d.3} parent=27 // pred_check_branch
            %160 = sbr.rel (0) target = $region32
          $region31: #{gated_deconv2d.3} parent=27 // pred_region
            // Predicated region
            $region33: #{gated_deconv2d.3} parent=31 // pred_check
              _
            $region34: #{gated_deconv2d.3} parent=31 // pred_check_branch
              %162 = sbr.rel target = $region36
            $region35: #{gated_deconv2d.3} parent=31 // pred_region
              // Predicated region
              $region48: #{gated_deconv2d.3} parent=35 // pred_check
                _
              $region49: #{gated_deconv2d.3} parent=35 // pred_check_branch
                %208 = sbr.rel (0) target = $region51
              $region50: #{gated_deconv2d.3} parent=35 // pred_region
                loop: start=0, step=1, limit=1
                $region52: #{gated_deconv2d.3} parent=50 // loop_pre_header
                  _
                $region53: #{gated_deconv2d.3} parent=50 // loop_header
                  %s210 = sphi 0, %s214
                  %p211 = scmp.ge.s32.totalorder %s210, 1
                  %s215 = sphi %s158, %s158
                  %s216 = sphi %s153, %s153
                $region54: #{gated_deconv2d.3} parent=50 // loop_header_branch
                  %213 = sbr.rel (%p211) target = $region58
                $region55: #{gated_deconv2d.3} parent=50 // loop_body
                  _
                $region56: #{gated_deconv2d.3} parent=50 // loop_footer
                  %s214 = sadd.s32 1, %s210
                $region57: #{gated_deconv2d.3} parent=50 // loop_footer_branch
                  %209 = sbr.rel target = $region53
                $region58: #{gated_deconv2d.3} parent=50 // loop_exit
                  _
                %s218 = ssub.s32 16, 1
                loop: start=0, step=1, limit=1
                $region59: #{gated_deconv2d.3} parent=50 // loop_pre_header
                  _
                $region60: #{gated_deconv2d.3} parent=50 // loop_header
                  %s220 = sphi 0, %s224
                  %p221 = scmp.ge.s32.totalorder %s220, 1
                  %s225 = sphi %s158, %s158
                  %s226 = sphi %s153, %s153
                $region61: #{gated_deconv2d.3} parent=50 // loop_header_branch
                  %223 = sbr.rel (%p221) target = $region65
                $region62: #{gated_deconv2d.3} parent=50 // loop_body
                  %v227 = vld [vmem:[%s225] sm:%s218]
                  %228 = vst [vmem:[%s226] sm:%s218] %v227
                  %v229 = vld [vmem:[%s225 + $0x4] sm:%s218]
                  %230 = vst [vmem:[%s226 + $0x4] sm:%s218] %v229
                  %v231 = vld [vmem:[%s225 + $0x10] sm:%s218]
                  %232 = vst [vmem:[%s226 + $0x8] sm:%s218] %v231
                  %v233 = vld [vmem:[%s225 + $0x14] sm:%s218]
                  %234 = vst [vmem:[%s226 + $0xc] sm:%s218] %v233
                  %v235 = vld [vmem:[%s225 + $0x20] sm:%s218]
                  %236 = vst [vmem:[%s226 + $0x10] sm:%s218] %v235
                  %v237 = vld [vmem:[%s225 + $0x24] sm:%s218]
                  %238 = vst [vmem:[%s226 + $0x14] sm:%s218] %v237
                  %v239 = vld [vmem:[%s225 + $0x30] sm:%s218]
                  %240 = vst [vmem:[%s226 + $0x18] sm:%s218] %v239
                  %v241 = vld [vmem:[%s225 + $0x34] sm:%s218]
                  %242 = vst [vmem:[%s226 + $0x1c] sm:%s218] %v241
                  %v243 = vld [vmem:[%s225 + $0x40] sm:%s218]
                  %244 = vst [vmem:[%s226 + $0x20] sm:%s218] %v243
                  %v245 = vld [vmem:[%s225 + $0x44] sm:%s218]
                  %246 = vst [vmem:[%s226 + $0x24] sm:%s218] %v245
                  %v247 = vld [vmem:[%s225 + $0x50] sm:%s218]
                  %248 = vst [vmem:[%s226 + $0x28] sm:%s218] %v247
                  %v249 = vld [vmem:[%s225 + $0x54] sm:%s218]
                  %250 = vst [vmem:[%s226 + $0x2c] sm:%s218] %v249
                  %v251 = vld [vmem:[%s225 + $0x60] sm:%s218]
                  %252 = vst [vmem:[%s226 + $0x30] sm:%s218] %v251
                  %v253 = vld [vmem:[%s225 + $0x64] sm:%s218]
                  %254 = vst [vmem:[%s226 + $0x34] sm:%s218] %v253
                  %v255 = vld [vmem:[%s225 + $0x70] sm:%s218]
                  %256 = vst [vmem:[%s226 + $0x38] sm:%s218] %v255
                  %v257 = vld [vmem:[%s225 + $0x74] sm:%s218]
                  %258 = vst [vmem:[%s226 + $0x3c] sm:%s218] %v257
                $region63: #{gated_deconv2d.3} parent=50 // loop_footer
                  %s224 = sadd.s32 1, %s220
                $region64: #{gated_deconv2d.3} parent=50 // loop_footer_branch
                  %219 = sbr.rel target = $region60
                $region65: #{gated_deconv2d.3} parent=50 // loop_exit
                  _
              $region51: #{gated_deconv2d.3} parent=35 // pred_fallthru
                _
            $region36: #{gated_deconv2d.3} parent=31 // pred_fallthru
              _
            // Predicated region
            $region37: #{gated_deconv2d.3} parent=31 // pred_check
              _
            $region38: #{gated_deconv2d.3} parent=31 // pred_check_branch
              %164 = sbr.rel (0) target = $region40
            $region39: #{gated_deconv2d.3} parent=31 // pred_region
              %s166 = ssub.s32 16, 1
              loop: start=0, step=1, limit=1
              $region41: #{gated_deconv2d.3} parent=39 // loop_pre_header
                _
              $region42: #{gated_deconv2d.3} parent=39 // loop_header
                %s168 = sphi 0, %s172
                %p169 = scmp.ge.s32.totalorder %s168, 1
                %s173 = sphi %s158, %s158
                %s174 = sphi %s153, %s153
              $region43: #{gated_deconv2d.3} parent=39 // loop_header_branch
                %171 = sbr.rel (%p169) target = $region47
              $region44: #{gated_deconv2d.3} parent=39 // loop_body
                %v175 = vld [vmem:[%s173] sm:%s166]
                %176 = vst [vmem:[%s174] sm:%s166] %v175
                %v177 = vld [vmem:[%s173 + $0x4] sm:%s166]
                %178 = vst [vmem:[%s174 + $0x4] sm:%s166] %v177
                %v179 = vld [vmem:[%s173 + $0x10] sm:%s166]
                %180 = vst [vmem:[%s174 + $0x8] sm:%s166] %v179
                %v181 = vld [vmem:[%s173 + $0x14] sm:%s166]
                %182 = vst [vmem:[%s174 + $0xc] sm:%s166] %v181
                %v183 = vld [vmem:[%s173 + $0x20] sm:%s166]
                %184 = vst [vmem:[%s174 + $0x10] sm:%s166] %v183
                %v185 = vld [vmem:[%s173 + $0x24] sm:%s166]
                %186 = vst [vmem:[%s174 + $0x14] sm:%s166] %v185
                %v187 = vld [vmem:[%s173 + $0x30] sm:%s166]
                %188 = vst [vmem:[%s174 + $0x18] sm:%s166] %v187
                %v189 = vld [vmem:[%s173 + $0x34] sm:%s166]
                %190 = vst [vmem:[%s174 + $0x1c] sm:%s166] %v189
                %v191 = vld [vmem:[%s173 + $0x40] sm:%s166]
                %192 = vst [vmem:[%s174 + $0x20] sm:%s166] %v191
                %v193 = vld [vmem:[%s173 + $0x44] sm:%s166]
                %194 = vst [vmem:[%s174 + $0x24] sm:%s166] %v193
                %v195 = vld [vmem:[%s173 + $0x50] sm:%s166]
                %196 = vst [vmem:[%s174 + $0x28] sm:%s166] %v195
                %v197 = vld [vmem:[%s173 + $0x54] sm:%s166]
                %198 = vst [vmem:[%s174 + $0x2c] sm:%s166] %v197
                %v199 = vld [vmem:[%s173 + $0x60] sm:%s166]
                %200 = vst [vmem:[%s174 + $0x30] sm:%s166] %v199
                %v201 = vld [vmem:[%s173 + $0x64] sm:%s166]
                %202 = vst [vmem:[%s174 + $0x34] sm:%s166] %v201
                %v203 = vld [vmem:[%s173 + $0x70] sm:%s166]
                %204 = vst [vmem:[%s174 + $0x38] sm:%s166] %v203
                %v205 = vld [vmem:[%s173 + $0x74] sm:%s166]
                %206 = vst [vmem:[%s174 + $0x3c] sm:%s166] %v205
              $region45: #{gated_deconv2d.3} parent=39 // loop_footer
                %s172 = sadd.s32 1, %s168
              $region46: #{gated_deconv2d.3} parent=39 // loop_footer_branch
                %167 = sbr.rel target = $region42
              $region47: #{gated_deconv2d.3} parent=39 // loop_exit
                _
            $region40: #{gated_deconv2d.3} parent=31 // pred_fallthru
              _
          $region32: #{gated_deconv2d.3} parent=27 // pred_fallthru
            _
          %259 = vnop
        $region28: #{gated_deconv2d.3} parent=23 // pred_fallthru
          _
      $region24: #{gated_deconv2d.3} parent=5 // pred_fallthru
        _
      %p260 = scmp.le.s32.totalorder 1, %s12
      %p261 = scmp.lt.s32.totalorder %s12, 5
      %p262 = pnand %p260, %p261
      %p263 = pneg %p262
      // Predicated region
      $region66: #{gated_deconv2d.3} parent=5 // pred_check
        _
      $region67: #{gated_deconv2d.3} parent=5 // pred_check_branch
        %265 = sbr.rel (%p262) target = $region69
      $region68: #{gated_deconv2d.3} parent=5 // pred_region
        %s266 = ssub.s32 %s12, 1
        %s267 = sand.u32 %s39, 1
        %s268 = sand.u32 %s39, 1
        %s269 = smul.addr %s268, 64
        %s270 = scalar_lea.vmem [#allocation2], %s269
        // Predicated region
        $region70: #{gated_deconv2d.3} parent=68 // pred_check
          %p271 = pneg %p52
        $region71: #{gated_deconv2d.3} parent=68 // pred_check_branch
          %273 = sbr.rel (%p271) target = $region73
        $region72: #{gated_deconv2d.3} parent=68 // pred_region
          _
        $region73: #{gated_deconv2d.3} parent=68 // pred_fallthru
          _
        %s274 = sand.u32 %s39, 1
        %s275 = sand.u32 %s39, 1
        %s276 = smul.addr %s275, 64
        %s277 = scalar_lea.vmem [#allocation2], %s276
        %p278 = pneg %p52
        %p279 = pneg %p49
        %p280 = pneg %p73
        %p281 = pneg %p70
        %p282 = pneg %p94
        %p283 = pneg %p91
        %p284 = pneg %p122
        %p285 = pneg %p119
        %s286 = sand.u32 %s109, 1
        %s287 = scalar_lea.sflag [#allocation4], %s286
        %s288 = sand.u32 %s109, 1
        %s289 = smul.addr %s288, 128
        %s290 = scalar_lea.vmem [#allocation3], %s289
        %s291 = smul.u32 2, %s22
        %s292 = smul.u32 2, %s22
        %v293 = vld [vmem:[%s270] sm:$0xf]
        %v294 = vld [vmem:[%s270 + $0x4] sm:$0xf]
        %v295 = vld [vmem:[%s270 + $0x8] sm:$0xf]
        %v296 = vld [vmem:[%s270 + $0xc] sm:$0xf]
        %v297 = vld [vmem:[%s270 + $0x10] sm:$0xf]
        %v298 = vld [vmem:[%s270 + $0x14] sm:$0xf]
        %v299 = vld [vmem:[%s270 + $0x18] sm:$0xf]
        %v300 = vld [vmem:[%s270 + $0x1c] sm:$0xf]
        %v301 = vld [vmem:[%s270 + $0x20] sm:$0xf]
        %v302 = vld [vmem:[%s270 + $0x24] sm:$0xf]
        %v303 = vld [vmem:[%s270 + $0x28] sm:$0xf]
        %v304 = vld [vmem:[%s270 + $0x2c] sm:$0xf]
        %v305 = vld [vmem:[%s270 + $0x30] sm:$0xf]
        %v306 = vld [vmem:[%s270 + $0x34] sm:$0xf]
        %v307 = vld [vmem:[%s270 + $0x38] sm:$0xf]
        %v308 = vld [vmem:[%s270 + $0x3c] sm:$0xf]
        %v309 = vunpack.c.l.bf16 %v293
        %v310 = vunpack.c.l.bf16 %v294
        %v311 = vunpack.c.l.bf16 %v295
        %v312 = vunpack.c.l.bf16 %v296
        %v313 = vunpack.c.l.bf16 %v297
        %v314 = vunpack.c.l.bf16 %v298
        %v315 = vunpack.c.l.bf16 %v299
        %v316 = vunpack.c.l.bf16 %v300
        %v317 = vunpack.c.l.bf16 %v301
        %v318 = vunpack.c.l.bf16 %v302
        %v319 = vunpack.c.l.bf16 %v303
        %v320 = vunpack.c.l.bf16 %v304
        %v321 = vunpack.c.l.bf16 %v305
        %v322 = vunpack.c.l.bf16 %v306
        %v323 = vunpack.c.l.bf16 %v307
        %v324 = vunpack.c.l.bf16 %v308
        %v325 = vld [vmem:[%s1] sm:$0x1]
        %v326 = vld [vmem:[%s1 + $0x1] sm:$0x1]
        %v327 = vld [vmem:[%s1 + $0x2] sm:$0x1]
        %v328 = vld [vmem:[%s1 + $0x3] sm:$0x1]
        %v329 = vld [vmem:[%s1 + $0x4] sm:$0x1]
        %v330 = vld [vmem:[%s1 + $0x5] sm:$0x1]
        %v331 = vld [vmem:[%s1 + $0x6] sm:$0x1]
        %v332 = vld [vmem:[%s1 + $0x7] sm:$0x1]
        %v341 = vlaneseq
        %v342 = vshrl.u32 %v341, 7
        %v343 = vsub.s32 0, %v342
        %v344 = vrot.slane %v325, %v343
        %v345 = vlaneseq
        %v346 = vshrl.u32 %v345, 7
        %v347 = vsub.s32 0, %v346
        %v348 = vrot.slane %v326, %v347
        %v349 = vlaneseq
        %v350 = vshrl.u32 %v349, 7
        %v351 = vsub.s32 0, %v350
        %v352 = vrot.slane %v327, %v351
        %v353 = vlaneseq
        %v354 = vshrl.u32 %v353, 7
        %v355 = vsub.s32 0, %v354
        %v356 = vrot.slane %v328, %v355
        %v357 = vlaneseq
        %v358 = vshrl.u32 %v357, 7
        %v359 = vsub.s32 0, %v358
        %v360 = vrot.slane %v329, %v359
        %v361 = vlaneseq
        %v362 = vshrl.u32 %v361, 7
        %v363 = vsub.s32 0, %v362
        %v364 = vrot.slane %v330, %v363
        %v365 = vlaneseq
        %v366 = vshrl.u32 %v365, 7
        %v367 = vsub.s32 0, %v366
        %v368 = vrot.slane %v331, %v367
        %v369 = vlaneseq
        %v370 = vshrl.u32 %v369, 7
        %v371 = vsub.s32 0, %v370
        %v372 = vrot.slane %v332, %v371
        %373 = vset.pattern.permute.xlu0 0
        %374 = vperm.xlu0 %373, %v344
        %v375 = vpop.permute.xlu0 %374
        %377 = vset.pattern.permute.xlu0 0
        %378 = vperm.xlu0 %377, %v348
        %v379 = vpop.permute.xlu0 %378
        %381 = vset.pattern.permute.xlu0 0
        %382 = vperm.xlu0 %381, %v352
        %v383 = vpop.permute.xlu0 %382
        %385 = vset.pattern.permute.xlu0 0
        %386 = vperm.xlu0 %385, %v356
        %v387 = vpop.permute.xlu0 %386
        %389 = vset.pattern.permute.xlu0 0
        %390 = vperm.xlu0 %389, %v360
        %v391 = vpop.permute.xlu0 %390
        %393 = vset.pattern.permute.xlu0 0
        %394 = vperm.xlu0 %393, %v364
        %v395 = vpop.permute.xlu0 %394
        %397 = vset.pattern.permute.xlu0 0
        %398 = vperm.xlu0 %397, %v368
        %v399 = vpop.permute.xlu0 %398
        %401 = vset.pattern.permute.xlu0 0
        %402 = vperm.xlu0 %401, %v372
        %v403 = vpop.permute.xlu0 %402
        %v405 = vmul.f32 %v309, %v375
        %v406 = vmul.f32 %v310, %v375
        %v407 = vmul.f32 %v311, %v379
        %v408 = vmul.f32 %v312, %v379
        %v409 = vmul.f32 %v313, %v383
        %v410 = vmul.f32 %v314, %v383
        %v411 = vmul.f32 %v315, %v387
        %v412 = vmul.f32 %v316, %v387
        %v413 = vmul.f32 %v317, %v391
        %v414 = vmul.f32 %v318, %v391
        %v415 = vmul.f32 %v319, %v395
        %v416 = vmul.f32 %v320, %v395
        %v417 = vmul.f32 %v321, %v399
        %v418 = vmul.f32 %v322, %v399
        %v419 = vmul.f32 %v323, %v403
        %v420 = vmul.f32 %v324, %v403
        %v421 = vld [vmem:[%s2] sm:$0x1]
        %v422 = vld [vmem:[%s2 + $0x1] sm:$0x1]
        %v423 = vld [vmem:[%s2 + $0x2] sm:$0x1]
        %v424 = vld [vmem:[%s2 + $0x3] sm:$0x1]
        %v425 = vld [vmem:[%s2 + $0x4] sm:$0x1]
        %v426 = vld [vmem:[%s2 + $0x5] sm:$0x1]
        %v427 = vld [vmem:[%s2 + $0x6] sm:$0x1]
        %v428 = vld [vmem:[%s2 + $0x7] sm:$0x1]
        %v437 = vlaneseq
        %v438 = vshrl.u32 %v437, 7
        %v439 = vsub.s32 0, %v438
        %v440 = vrot.slane %v421, %v439
        %v441 = vlaneseq
        %v442 = vshrl.u32 %v441, 7
        %v443 = vsub.s32 0, %v442
        %v444 = vrot.slane %v422, %v443
        %v445 = vlaneseq
        %v446 = vshrl.u32 %v445, 7
        %v447 = vsub.s32 0, %v446
        %v448 = vrot.slane %v423, %v447
        %v449 = vlaneseq
        %v450 = vshrl.u32 %v449, 7
        %v451 = vsub.s32 0, %v450
        %v452 = vrot.slane %v424, %v451
        %v453 = vlaneseq
        %v454 = vshrl.u32 %v453, 7
        %v455 = vsub.s32 0, %v454
        %v456 = vrot.slane %v425, %v455
        %v457 = vlaneseq
        %v458 = vshrl.u32 %v457, 7
        %v459 = vsub.s32 0, %v458
        %v460 = vrot.slane %v426, %v459
        %v461 = vlaneseq
        %v462 = vshrl.u32 %v461, 7
        %v463 = vsub.s32 0, %v462
        %v464 = vrot.slane %v427, %v463
        %v465 = vlaneseq
        %v466 = vshrl.u32 %v465, 7
        %v467 = vsub.s32 0, %v466
        %v468 = vrot.slane %v428, %v467
        %469 = vset.pattern.permute.xlu0 0
        %470 = vperm.xlu0 %469, %v440
        %v471 = vpop.permute.xlu0 %470
        %473 = vset.pattern.permute.xlu0 0
        %474 = vperm.xlu0 %473, %v444
        %v475 = vpop.permute.xlu0 %474
        %477 = vset.pattern.permute.xlu0 0
        %478 = vperm.xlu0 %477, %v448
        %v479 = vpop.permute.xlu0 %478
        %481 = vset.pattern.permute.xlu0 0
        %482 = vperm.xlu0 %481, %v452
        %v483 = vpop.permute.xlu0 %482
        %485 = vset.pattern.permute.xlu0 0
        %486 = vperm.xlu0 %485, %v456
        %v487 = vpop.permute.xlu0 %486
        %489 = vset.pattern.permute.xlu0 0
        %490 = vperm.xlu0 %489, %v460
        %v491 = vpop.permute.xlu0 %490
        %493 = vset.pattern.permute.xlu0 0
        %494 = vperm.xlu0 %493, %v464
        %v495 = vpop.permute.xlu0 %494
        %497 = vset.pattern.permute.xlu0 0
        %498 = vperm.xlu0 %497, %v468
        %v499 = vpop.permute.xlu0 %498
        %v501 = vadd.f32 %v405, %v471
        %v502 = vadd.f32 %v406, %v471
        %v503 = vadd.f32 %v407, %v475
        %v504 = vadd.f32 %v408, %v475
        %v505 = vadd.f32 %v409, %v479
        %v506 = vadd.f32 %v410, %v479
        %v507 = vadd.f32 %v411, %v483
        %v508 = vadd.f32 %v412, %v483
        %v509 = vadd.f32 %v413, %v487
        %v510 = vadd.f32 %v414, %v487
        %v511 = vadd.f32 %v415, %v491
        %v512 = vadd.f32 %v416, %v491
        %v513 = vadd.f32 %v417, %v495
        %v514 = vadd.f32 %v418, %v495
        %v515 = vadd.f32 %v419, %v499
        %v516 = vadd.f32 %v420, %v499
        %vm517 = vcmask 261120
        %518 = vst.msk [vmem:[%s290] sm:$0xff] %vm517, %v501
        %519 = vst.msk [vmem:[%s290 + $0x8] sm:$0xff] %vm517, %v502
        %520 = vst.msk [vmem:[%s290 + $0x10] sm:$0xff] %vm517, %v503
        %521 = vst.msk [vmem:[%s290 + $0x18] sm:$0xff] %vm517, %v504
        %522 = vst.msk [vmem:[%s290 + $0x20] sm:$0xff] %vm517, %v505
        %523 = vst.msk [vmem:[%s290 + $0x28] sm:$0xff] %vm517, %v506
        %524 = vst.msk [vmem:[%s290 + $0x30] sm:$0xff] %vm517, %v507
        %525 = vst.msk [vmem:[%s290 + $0x38] sm:$0xff] %vm517, %v508
        %526 = vst.msk [vmem:[%s290 + $0x40] sm:$0xff] %vm517, %v509
        %527 = vst.msk [vmem:[%s290 + $0x48] sm:$0xff] %vm517, %v510
        %528 = vst.msk [vmem:[%s290 + $0x50] sm:$0xff] %vm517, %v511
        %529 = vst.msk [vmem:[%s290 + $0x58] sm:$0xff] %vm517, %v512
        %530 = vst.msk [vmem:[%s290 + $0x60] sm:$0xff] %vm517, %v513
        %531 = vst.msk [vmem:[%s290 + $0x68] sm:$0xff] %vm517, %v514
        %532 = vst.msk [vmem:[%s290 + $0x70] sm:$0xff] %vm517, %v515
        %533 = vst.msk [vmem:[%s290 + $0x78] sm:$0xff] %vm517, %v516
        %s534 = sand.u32 %s109, 1
        %s535 = scalar_lea.sflag [#allocation4], %s534
        %s536 = sand.u32 %s109, 1
        %s537 = smul.addr %s536, 128
        %s538 = scalar_lea.vmem [#allocation3], %s537
        // Predicated region
        $region74: #{gated_deconv2d.3} parent=68 // pred_check
          %p539 = pneg %p119
        $region75: #{gated_deconv2d.3} parent=68 // pred_check_branch
          %541 = sbr.rel (%p539) target = $region77
        $region76: #{gated_deconv2d.3} parent=68 // pred_region
          #allocation6 [shape = 'u32[6]{0}', space=smem, size = 0x18, scoped, tag = 'DMA stride descriptor']
          %s542 = smul.u32 2, %s22
          %s544 = ssub.s32 2048, 2048
          %545 = vsyncadd %s535, %s544
          %s546 = smul.addr %s21, 32
          %s547 = sadd.s32 %s542, %s546
          %s548 = smul.addr %s547, 128
          %s549 = scalar_lea.hbm %s3, %s548
          %s551 = sshll.u32 1, 14
          %s552 = sxor.u32 4294967295, %s551
          %s555 = sshll.u32 7, 18
          %s556 = sxor.u32 4294967295, %s555
          %s557 = sand.u32 0, %s556
          %s559 = sor.u32 %s557, 0
          %s560 = sshll.u32 %s538, 4
          %s561 = int_to_ptr.vmem [resolvable:$true] %s560
          %567 = sst [smem:[#allocation6]] 256
          %s568 = scalar_lea.smem [#allocation6], 1
          %569 = sst [smem:[%s568]] 512
          %s570 = scalar_lea.smem [#allocation6], 2
          %571 = sst [smem:[%s570]] 2
          %s572 = scalar_lea.smem [#allocation6], 3
          %573 = sst [smem:[%s572]] 128
          %s574 = scalar_lea.smem [#allocation6], 4
          %575 = sst [smem:[%s574]] 128
          %s576 = scalar_lea.smem [#allocation6], 5
          %577 = sst [smem:[%s576]] 8
          %579 = dma.general %s561, 2048, %s549, %s535, 131072, [#allocation6], %s559, 0
        $region77: #{gated_deconv2d.3} parent=68 // pred_fallthru
          _
      $region69: #{gated_deconv2d.3} parent=5 // pred_fallthru
        _
      %p580 = scmp.le.s32.totalorder 2, %s12
      // Predicated region
      $region78: #{gated_deconv2d.3} parent=5 // pred_check
        %p581 = pneg %p580
      $region79: #{gated_deconv2d.3} parent=5 // pred_check_branch
        %583 = sbr.rel (%p581) target = $region81
      $region80: #{gated_deconv2d.3} parent=5 // pred_region
        %s584 = ssub.s32 %s12, 2
        // Predicated region
        $region82: #{gated_deconv2d.3} parent=80 // pred_check
          %p585 = pneg %p125
        $region83: #{gated_deconv2d.3} parent=80 // pred_check_branch
          %587 = sbr.rel (%p585) target = $region85
        $region84: #{gated_deconv2d.3} parent=80 // pred_region
          %s588 = sand.u32 %s110, 1
          %s589 = scalar_lea.sflag [#allocation4], %s588
          %s590 = sand.u32 %s110, 1
          %s591 = smul.addr %s590, 128
          %s592 = scalar_lea.vmem [#allocation3], %s591
          %593 = dma.done %s589, 2048
        $region85: #{gated_deconv2d.3} parent=80 // pred_fallthru
          _
      $region81: #{gated_deconv2d.3} parent=5 // pred_fallthru
        _
    $region6: #{gated_deconv2d.3} parent=1 // loop_footer
      %s16 = sadd.s32 1, %s12
    $region7: #{gated_deconv2d.3} parent=1 // loop_footer_branch
      %11 = sbr.rel target = $region3
    $region8: #{gated_deconv2d.3} parent=1 // loop_exit
      _
    %594 = vsyncpa [#allocation4], 1
    %s595 = scalar_lea.sflag [#allocation4], 1
    %596 = vsyncpa %s595, 1

// kernel: gated_deconv2d.2
$region0: #{gated_deconv2d.2}
  #allocation0 [shape = 'u32[]', space=smem, size = 0x4, offset = 0x4, fixed_abs, tag = 'smem constant byte address 0x4 - core index']
  #allocation1 [shape = 'u32[144,128]{1,0:T(1,128)}', space=vmem, size = 0x12000, scoped, tag = 'internal scratch']
  #allocation2 [shape = 'bf16[36,640]{1,0:T(8,128)(2,1)}', space=vmem, size = 0xc800, scoped, tag = 'scratch operand']
  %s0 = inlined_call_operand.vmem [shape: bf16[2,2,4,728], index: 0, kind: input, shape index: {}]
  %s1 = inlined_call_operand.vmem [shape: bf16[16,36], index: 1, kind: input, shape index: {}]
  %s2 = inlined_call_operand.vmem [shape: f32[16,1], index: 2, kind: input, shape index: {}]
  %s3 = inlined_call_operand.vmem [shape: f32[1,640], index: 3, kind: input, shape index: {}]
  %s4 = inlined_call_operand.vmem [shape: bf16[2,8,1280], index: 4, kind: output, shape index: {0}]
  %s5 = inlined_call_operand.vmem [shape: f32[2,2,8,1], index: 5, kind: output, shape index: {1}]
  %s6 = inlined_call_operand.vmem [shape: f32[2,2,8,1], index: 6, kind: output, shape index: {2}]
  %7 = xla_tuple %s4, %s5, %s6
  %s8 = sld [smem:[#allocation0]]
  $region65: #{gated_deconv2d.2} parent=0
    _
  %s10 = ssub.s32 1, %s8
  %s11 = scalar_select 0, %s10, %s8
  loop: start=0, step=1, limit=6
  $region2: #{gated_deconv2d.2} parent=0 // loop_pre_header
    _
  $region3: #{gated_deconv2d.2} parent=0 // loop_header
    %s13 = sphi 0, %s17
    %p14 = scmp.ge.s32.totalorder %s13, 6
    %s20 = sphi 0, %s32
    %s21 = sphi 0, %s28
    %s22 = sphi 0, %s20
    %s23 = sphi 0, %s21
    %s24 = sphi 0, %s22
    %s25 = sphi 0, %s23
    %s37 = sphi 0, %s39
    %s40 = sphi 0, %s37
    %s41 = sphi 0, %s40
    %s57 = sphi 0, %s41
    %s61 = sphi 0, %s61
    %s63 = sphi 0, %s61
    %s64 = sphi 0, %s63
    %s78 = sphi 0, %s64
    %s82 = sphi 0, %s82
    %s84 = sphi 0, %s82
    %s85 = sphi 0, %s84
    %s99 = sphi 0, %s85
    %s103 = sphi 0, %s103
    %s105 = sphi 0, %s103
    %s106 = sphi 0, %s105
    %s120 = sphi 0, %s106
    %s128 = sphi 0, %s130
    %s131 = sphi 0, %s128
    %s132 = sphi 0, %s131
    %s148 = sphi 0, %s132
    %s156 = sphi 0, %s158
    %s159 = sphi 0, %s156
    %s160 = sphi 0, %s159
    %s176 = sphi 0, %s160
    %s184 = sphi 0, %s186
    %s187 = sphi 0, %s184
    %s188 = sphi 0, %s187
    %s204 = sphi 0, %s188
  $region4: #{gated_deconv2d.2} parent=0 // loop_header_branch
    %16 = sbr.rel (%p14) target = $region8
  $region5: #{gated_deconv2d.2} parent=0 // loop_body
    %s18 = ssub.s32 %s13, 1
    %s19 = ssub.s32 %s13, 2
    %s26 = sadd.s32 1, %s21
    %p27 = scmp.ge.s32.totalorder %s26, 2
    %s28 = scalar_select %p27, 0, %s26
    %s29 = sadd.s32 1, %s20
    %s30 = scalar_select %p27, %s29, %s20
    %p31 = scmp.ge.s32.totalorder %s30, 2
    %s32 = scalar_select %p31, 0, %s30
    %s33 = ssub.s32 %s20, %s32
    %s34 = ssub.s32 %s21, %s28
    %s35 = sor.u32 %s33, %s34
    %p36 = scmp.eq.s32.totalorder %s35, 0
    %s38 = sadd.s32 %s37, 1
    %s39 = scalar_select %p36, %s37, %s38
    %p42 = pneg %p36
    %p43 = scmp.eq.s32.totalorder %s13, 3
    %p44 = por %p42, %p43
    %p45 = scmp.ne.s32.totalorder %s37, %s40
    %p46 = scmp.eq.s32.totalorder %s13, 0
    %p47 = por %p45, %p46
    %p48 = scmp.ne.s32.totalorder %s37, %s40
    %p49 = scmp.eq.s32.totalorder %s18, 3
    %p50 = por %p48, %p49
    %p51 = scmp.ne.s32.totalorder %s40, %s41
    %p52 = scmp.eq.s32.totalorder %s18, 0
    %p53 = por %p51, %p52
    %p54 = scmp.ne.s32.totalorder %s40, %s41
    %p55 = scmp.eq.s32.totalorder %s19, 3
    %p56 = por %p54, %p55
    %p58 = scmp.ne.s32.totalorder %s41, %s57
    %p59 = scmp.eq.s32.totalorder %s19, 0
    %p60 = por %p58, %p59
    %s62 = sadd.s32 %s61, 1
    %p65 = scmp.eq.s32.totalorder %s13, 3
    %p66 = scmp.ne.s32.totalorder %s61, %s63
    %p67 = scmp.eq.s32.totalorder %s13, 0
    %p68 = por %p66, %p67
    %p69 = scmp.ne.s32.totalorder %s61, %s63
    %p70 = scmp.eq.s32.totalorder %s18, 3
    %p71 = por %p69, %p70
    %p72 = scmp.ne.s32.totalorder %s63, %s64
    %p73 = scmp.eq.s32.totalorder %s18, 0
    %p74 = por %p72, %p73
    %p75 = scmp.ne.s32.totalorder %s63, %s64
    %p76 = scmp.eq.s32.totalorder %s19, 3
    %p77 = por %p75, %p76
    %p79 = scmp.ne.s32.totalorder %s64, %s78
    %p80 = scmp.eq.s32.totalorder %s19, 0
    %p81 = por %p79, %p80
    %s83 = sadd.s32 %s82, 1
    %p86 = scmp.eq.s32.totalorder %s13, 3
    %p87 = scmp.ne.s32.totalorder %s82, %s84
    %p88 = scmp.eq.s32.totalorder %s13, 0
    %p89 = por %p87, %p88
    %p90 = scmp.ne.s32.totalorder %s82, %s84
    %p91 = scmp.eq.s32.totalorder %s18, 3
    %p92 = por %p90, %p91
    %p93 = scmp.ne.s32.totalorder %s84, %s85
    %p94 = scmp.eq.s32.totalorder %s18, 0
    %p95 = por %p93, %p94
    %p96 = scmp.ne.s32.totalorder %s84, %s85
    %p97 = scmp.eq.s32.totalorder %s19, 3
    %p98 = por %p96, %p97
    %p100 = scmp.ne.s32.totalorder %s85, %s99
    %p101 = scmp.eq.s32.totalorder %s19, 0
    %p102 = por %p100, %p101
    %s104 = sadd.s32 %s103, 1
    %p107 = scmp.eq.s32.totalorder %s13, 3
    %p108 = scmp.ne.s32.totalorder %s103, %s105
    %p109 = scmp.eq.s32.totalorder %s13, 0
    %p110 = por %p108, %p109
    %p111 = scmp.ne.s32.totalorder %s103, %s105
    %p112 = scmp.eq.s32.totalorder %s18, 3
    %p113 = por %p111, %p112
    %p114 = scmp.ne.s32.totalorder %s105, %s106
    %p115 = scmp.eq.s32.totalorder %s18, 0
    %p116 = por %p114, %p115
    %p117 = scmp.ne.s32.totalorder %s105, %s106
    %p118 = scmp.eq.s32.totalorder %s19, 3
    %p119 = por %p117, %p118
    %p121 = scmp.ne.s32.totalorder %s106, %s120
    %p122 = scmp.eq.s32.totalorder %s19, 0
    %p123 = por %p121, %p122
    %s124 = ssub.s32 %s20, %s32
    %s125 = ssub.s32 %s21, %s28
    %s126 = sor.u32 %s124, %s125
    %p127 = scmp.eq.s32.totalorder %s126, 0
    %s129 = sadd.s32 %s128, 1
    %s130 = scalar_select %p127, %s128, %s129
    %p133 = pneg %p127
    %p134 = scmp.eq.s32.totalorder %s13, 3
    %p135 = por %p133, %p134
    %p136 = scmp.ne.s32.totalorder %s128, %s131
    %p137 = scmp.eq.s32.totalorder %s13, 0
    %p138 = por %p136, %p137
    %p139 = scmp.ne.s32.totalorder %s128, %s131
    %p140 = scmp.eq.s32.totalorder %s18, 3
    %p141 = por %p139, %p140
    %p142 = scmp.ne.s32.totalorder %s131, %s132
    %p143 = scmp.eq.s32.totalorder %s18, 0
    %p144 = por %p142, %p143
    %p145 = scmp.ne.s32.totalorder %s131, %s132
    %p146 = scmp.eq.s32.totalorder %s19, 3
    %p147 = por %p145, %p146
    %p149 = scmp.ne.s32.totalorder %s132, %s148
    %p150 = scmp.eq.s32.totalorder %s19, 0
    %p151 = por %p149, %p150
    %s152 = ssub.s32 %s20, %s32
    %s153 = ssub.s32 %s21, %s28
    %s154 = sor.u32 %s152, %s153
    %p155 = scmp.eq.s32.totalorder %s154, 0
    %s157 = sadd.s32 %s156, 1
    %s158 = scalar_select %p155, %s156, %s157
    %p161 = pneg %p155
    %p162 = scmp.eq.s32.totalorder %s13, 3
    %p163 = por %p161, %p162
    %p164 = scmp.ne.s32.totalorder %s156, %s159
    %p165 = scmp.eq.s32.totalorder %s13, 0
    %p166 = por %p164, %p165
    %p167 = scmp.ne.s32.totalorder %s156, %s159
    %p168 = scmp.eq.s32.totalorder %s18, 3
    %p169 = por %p167, %p168
    %p170 = scmp.ne.s32.totalorder %s159, %s160
    %p171 = scmp.eq.s32.totalorder %s18, 0
    %p172 = por %p170, %p171
    %p173 = scmp.ne.s32.totalorder %s159, %s160
    %p174 = scmp.eq.s32.totalorder %s19, 3
    %p175 = por %p173, %p174
    %p177 = scmp.ne.s32.totalorder %s160, %s176
    %p178 = scmp.eq.s32.totalorder %s19, 0
    %p179 = por %p177, %p178
    %s180 = ssub.s32 %s20, %s32
    %s181 = ssub.s32 %s21, %s28
    %s182 = sor.u32 %s180, %s181
    %p183 = scmp.eq.s32.totalorder %s182, 0
    %s185 = sadd.s32 %s184, 1
    %s186 = scalar_select %p183, %s184, %s185
    %p189 = pneg %p183
    %p190 = scmp.eq.s32.totalorder %s13, 3
    %p191 = por %p189, %p190
    %p192 = scmp.ne.s32.totalorder %s184, %s187
    %p193 = scmp.eq.s32.totalorder %s13, 0
    %p194 = por %p192, %p193
    %p195 = scmp.ne.s32.totalorder %s184, %s187
    %p196 = scmp.eq.s32.totalorder %s18, 3
    %p197 = por %p195, %p196
    %p198 = scmp.ne.s32.totalorder %s187, %s188
    %p199 = scmp.eq.s32.totalorder %s18, 0
    %p200 = por %p198, %p199
    %p201 = scmp.ne.s32.totalorder %s187, %s188
    %p202 = scmp.eq.s32.totalorder %s19, 3
    %p203 = por %p201, %p202
    %p205 = scmp.ne.s32.totalorder %s188, %s204
    %p206 = scmp.eq.s32.totalorder %s19, 0
    %p207 = por %p205, %p206
    %p208 = scmp.le.s32.totalorder 1, %s13
    %p209 = scmp.lt.s32.totalorder %s13, 5
    %p210 = pnand %p208, %p209
    %p211 = pneg %p210
    // Predicated region
    $region9: #{gated_deconv2d.2} parent=5 // pred_check
      _
    $region10: #{gated_deconv2d.2} parent=5 // pred_check_branch
      %213 = sbr.rel (%p210) target = $region12
    $region11: #{gated_deconv2d.2} parent=5 // pred_region
      %s214 = ssub.s32 %s13, 1
      // Predicated region
      $region13: #{gated_deconv2d.2} parent=11 // pred_check
        %p215 = pneg %p74
      $region14: #{gated_deconv2d.2} parent=11 // pred_check_branch
        %217 = sbr.rel (%p215) target = $region16
      $region15: #{gated_deconv2d.2} parent=11 // pred_region
        _
      $region16: #{gated_deconv2d.2} parent=11 // pred_fallthru
        _
      // Predicated region
      $region17: #{gated_deconv2d.2} parent=11 // pred_check
        %p218 = pneg %p95
      $region18: #{gated_deconv2d.2} parent=11 // pred_check_branch
        %220 = sbr.rel (%p218) target = $region20
      $region19: #{gated_deconv2d.2} parent=11 // pred_region
        _
      $region20: #{gated_deconv2d.2} parent=11 // pred_fallthru
        _
      // Predicated region
      $region21: #{gated_deconv2d.2} parent=11 // pred_check
        %p221 = pneg %p116
      $region22: #{gated_deconv2d.2} parent=11 // pred_check_branch
        %223 = sbr.rel (%p221) target = $region24
      $region23: #{gated_deconv2d.2} parent=11 // pred_region
        _
      $region24: #{gated_deconv2d.2} parent=11 // pred_fallthru
        _
    $region12: #{gated_deconv2d.2} parent=5 // pred_fallthru
      _
    %p224 = scmp.lt.s32.totalorder %s13, 4
    // Predicated region
    $region25: #{gated_deconv2d.2} parent=5 // pred_check
      %p225 = pneg %p224
    $region26: #{gated_deconv2d.2} parent=5 // pred_check_branch
      %227 = sbr.rel (%p225) target = $region28
    $region27: #{gated_deconv2d.2} parent=5 // pred_region
      // Predicated region
      $region29: #{gated_deconv2d.2} parent=27 // pred_check
        %p228 = pneg %p47
      $region30: #{gated_deconv2d.2} parent=27 // pred_check_branch
        %230 = sbr.rel (%p228) target = $region32
      $region31: #{gated_deconv2d.2} parent=27 // pred_region
        %p231 = scmp.lt.s32.totalorder %s20, 1
        %s232 = scalar_select %p231, %s20, 1
        %p233 = scmp.lt.s32.totalorder %s21, 1
        %s234 = scalar_select %p233, %s21, 1
        %s235 = smul.addr %s234, 6
        %s236 = smul.addr %s232, 12
        %s237 = sadd.s32 %s235, %s236
        %s238 = smul.addr %s237, 2
        %s239 = scalar_lea.vmem %s0, %s238
      $region32: #{gated_deconv2d.2} parent=27 // pred_fallthru
        _
    $region28: #{gated_deconv2d.2} parent=5 // pred_fallthru
      _
    %p240 = scmp.le.s32.totalorder 1, %s13
    %p241 = scmp.lt.s32.totalorder %s13, 5
    %p242 = pnand %p240, %p241
    %p243 = pneg %p242
    // Predicated region
    $region33: #{gated_deconv2d.2} parent=5 // pred_check
      _
    $region34: #{gated_deconv2d.2} parent=5 // pred_check_branch
      %245 = sbr.rel (%p242) target = $region36
    $region35: #{gated_deconv2d.2} parent=5 // pred_region
      %s246 = ssub.s32 %s13, 1
      %p247 = scmp.lt.s32.totalorder %s22, 1
      %s248 = scalar_select %p247, %s22, 1
      %p249 = scmp.lt.s32.totalorder %s23, 1
      %s250 = scalar_select %p249, %s23, 1
      %s251 = smul.addr %s250, 6
      %s252 = smul.addr %s248, 12
      %s253 = sadd.s32 %s251, %s252
      %s254 = smul.addr %s253, 2
      %s255 = scalar_lea.vmem %s0, %s254
      %p256 = pneg %p53
      %p257 = pneg %p50
      %p258 = pneg %p74
      %p259 = pneg %p71
      %p260 = pneg %p95
      %p261 = pneg %p92
      %p262 = pneg %p116
      %p263 = pneg %p113
      %p264 = pneg %p144
      %p265 = pneg %p141
      %s266 = smul.u32 5, %s23
      %p267 = scmp.lt.s32.totalorder %s22, 1
      %s268 = scalar_select %p267, %s22, 1
      %p269 = scmp.lt.s32.totalorder %s266, 9
      %s270 = scalar_select %p269, %s266, 9
      %s271 = smul.addr %s268, 10
      %s272 = sadd.s32 %s270, %s271
      %s273 = smul.addr %s272, 4
      %s274 = scalar_lea.vmem %s4, %s273
      %p275 = pneg %p172
      %p276 = pneg %p169
      %p277 = scmp.lt.s32.totalorder %s22, 1
      %s278 = scalar_select %p277, %s22, 1
      %p279 = scmp.lt.s32.totalorder %s23, 1
      %s280 = scalar_select %p279, %s23, 1
      %s281 = smul.addr %s278, 2
      %s282 = sadd.s32 %s280, %s281
      %s283 = smul.addr %s282, 8
      %s284 = scalar_lea.vmem %s5, %s283
      %p285 = pneg %p200
      %p286 = pneg %p197
      %p287 = scmp.lt.s32.totalorder %s22, 1
      %s288 = scalar_select %p287, %s22, 1
      %p289 = scmp.lt.s32.totalorder %s23, 1
      %s290 = scalar_select %p289, %s23, 1
      %s291 = smul.addr %s288, 2
      %s292 = sadd.s32 %s290, %s291
      %s293 = smul.addr %s292, 8
      %s294 = scalar_lea.vmem %s6, %s293
      %p295 = scmp.lt.s32.totalorder %s22, 1
      %s296 = scalar_select %p295, %s22, 1
      %p297 = scmp.lt.s32.totalorder %s23, 1
      %s298 = scalar_select %p297, %s23, 1
      %s299 = smul.addr %s298, 6
      %s300 = smul.addr %s296, 12
      %s301 = sadd.s32 %s299, %s300
      %s302 = smul.addr %s301, 2
      %s303 = scalar_lea.vmem %s0, %s302
      %s304 = smul.u32 5, %s23
      %p305 = scmp.lt.s32.totalorder %s22, 1
      %s306 = scalar_select %p305, %s22, 1
      %p307 = scmp.lt.s32.totalorder %s304, 9
      %s308 = scalar_select %p307, %s304, 9
      %s309 = smul.addr %s306, 10
      %s310 = sadd.s32 %s308, %s309
      %s311 = smul.addr %s310, 4
      %s312 = scalar_lea.vmem %s4, %s311
      %s313 = smul.u32 5, %s23
      %p314 = scmp.lt.s32.totalorder %s22, 1
      %s315 = scalar_select %p314, %s22, 1
      %p316 = scmp.lt.s32.totalorder %s23, 1
      %s317 = scalar_select %p316, %s23, 1
      %s318 = smul.addr %s315, 2
      %s319 = sadd.s32 %s317, %s318
      %s320 = smul.addr %s319, 8
      %s321 = scalar_lea.vmem %s5, %s320
      %p322 = scmp.lt.s32.totalorder %s22, 1
      %s323 = scalar_select %p322, %s22, 1
      %p324 = scmp.lt.s32.totalorder %s23, 1
      %s325 = scalar_select %p324, %s23, 1
      %s326 = smul.addr %s323, 2
      %s327 = sadd.s32 %s325, %s326
      %s328 = smul.addr %s327, 8
      %s329 = scalar_lea.vmem %s6, %s328
      %v331 = vld [vmem:[%s303] sm:$0xff]
      %v332 = vld [vmem:[%s303 + $0x8] sm:$0x3]
      %v335 = vcombine.high %v331, %v331
      %v337 = vunpack.c.l.s4 1983009808
      %v338 = vunpack.c.0.s8 %v337
      %v339 = vlaneseq
      %v340 = vshrl.u32 %v339, 7
      %v341 = vsub.s32 %v338, %v340
      %v342 = vrot.slane %v331, %v341
      %v344 = vunpack.c.l.s4 1983009808
      %v345 = vunpack.c.0.s8 %v344
      %v346 = vlaneseq
      %v347 = vshrl.u32 %v346, 7
      %v348 = vsub.s32 %v345, %v347
      %v349 = vrot.slane %v335, %v348
      %v351 = vunpack.c.l.s4 1983009808
      %v352 = vunpack.c.0.s8 %v351
      %v353 = vlaneseq
      %v354 = vshrl.u32 %v353, 7
      %v355 = vsub.s32 %v352, %v354
      %v356 = vrot.slane %v332, %v355
      %360 = vst [vmem:[#allocation2] sm:$0x33] %v342
      %361 = vst [vmem:[#allocation2 + $0x8] sm:$0x33] %v349
      %362 = vst [vmem:[#allocation2 + $0x10] sm:$0x3] %v356
      %v363 = vld [vmem:[%s303] sm:$0xff]
      %v364 = vld [vmem:[%s303 + $0x8] sm:$0xf]
      %v367 = vcombine.low %v363, %v363
      %v369 = vunpack.c.l.s4 1983009808
      %v370 = vunpack.c.0.s8 %v369
      %v371 = vlaneseq
      %v372 = vshrl.u32 %v371, 7
      %v373 = vsub.s32 %v370, %v372
      %v374 = vrot.slane %v367, %v373
      %v376 = vunpack.c.l.s4 1983009808
      %v377 = vunpack.c.0.s8 %v376
      %v378 = vlaneseq
      %v379 = vshrl.u32 %v378, 7
      %v380 = vsub.s32 %v377, %v379
      %v381 = vrot.slane %v363, %v380
      %v382 = vcombine.low %v364, %v364
      %v384 = vunpack.c.l.s4 1983009808
      %v385 = vunpack.c.0.s8 %v384
      %v386 = vlaneseq
      %v387 = vshrl.u32 %v386, 7
      %v388 = vsub.s32 %v385, %v387
      %v389 = vrot.slane %v382, %v388
      %390 = vrot.lane.b32.xlu0 %v374, 127
      %v391 = vpop.permute.xlu0 %390
      %392 = vrot.lane.b32.xlu0 %v381, 127
      %v393 = vpop.permute.xlu0 %392
      %394 = vrot.lane.b32.xlu0 %v389, 127
      %v395 = vpop.permute.xlu0 %394
      %v396 = vrot.slane %v391, 4
      %v397 = vrot.slane %v393, 4
      %v398 = vrot.slane %v395, 4
      %vm399 = vcmask 1043456
      %v400 = vsel %vm399, %v396, %v397
      %vm401 = vcmask 1039360
      %v402 = vsel %vm401, %v391, %v400
      %v403 = vsel %vm399, %v397, %v398
      %v404 = vsel %vm401, %v393, %v403
      %v405 = vsel %vm401, %v395, %v398
      %409 = vst [vmem:[#allocation2] sm:$0xcc] %v402
      %410 = vst [vmem:[#allocation2 + $0x8] sm:$0xcc] %v404
      %411 = vst [vmem:[#allocation2 + $0x10] sm:$0xc] %v405
      %v412 = vld [vmem:[%s303] sm:$0xff]
      %v413 = vld [vmem:[%s303 + $0x8] sm:$0xf]
      %v416 = vcombine.high %v412, %v412
      %v418 = vunpack.c.l.s4 1983009808
      %v419 = vunpack.c.0.s8 %v418
      %v420 = vlaneseq
      %v421 = vshrl.u32 %v420, 7
      %v422 = vsub.s32 %v419, %v421
      %v423 = vrot.slane %v412, %v422
      %v425 = vunpack.c.l.s4 1983009808
      %v426 = vunpack.c.0.s8 %v425
      %v427 = vlaneseq
      %v428 = vshrl.u32 %v427, 7
      %v429 = vsub.s32 %v426, %v428
      %v430 = vrot.slane %v416, %v429
      %v432 = vunpack.c.l.s4 1983009808
      %v433 = vunpack.c.0.s8 %v432
      %v434 = vlaneseq
      %v435 = vshrl.u32 %v434, 7
      %v436 = vsub.s32 %v433, %v435
      %v437 = vrot.slane %v413, %v436
      %438 = vrot.lane.b32.xlu0 %v423, 126
      %v439 = vpop.permute.xlu0 %438
      %440 = vrot.lane.b32.xlu0 %v430, 126
      %v441 = vpop.permute.xlu0 %440
      %442 = vrot.lane.b32.xlu0 %v437, 126
      %v443 = vpop.permute.xlu0 %442
      %v444 = vrot.slane %v439, 4
      %v445 = vrot.slane %v441, 4
      %v446 = vrot.slane %v443, 4
      %v447 = vsel %vm399, %v444, %v445
      %vm448 = vcmask 1031168
      %v449 = vsel %vm448, %v439, %v447
      %v450 = vsel %vm399, %v445, %v446
      %v451 = vsel %vm448, %v441, %v450
      %v452 = vsel %vm448, %v443, %v446
      %456 = vst [vmem:[#allocation2 + $0x14] sm:$0x33] %v449
      %457 = vst [vmem:[#allocation2 + $0x1c] sm:$0x33] %v451
      %458 = vst [vmem:[#allocation2 + $0x24] sm:$0x3] %v452
      %v459 = vld [vmem:[%s303] sm:$0xff]
      %v460 = vld [vmem:[%s303 + $0x8] sm:$0xf]
      %v463 = vcombine.low %v459, %v459
      %v465 = vunpack.c.l.s4 1983009808
      %v466 = vunpack.c.0.s8 %v465
      %v467 = vlaneseq
      %v468 = vshrl.u32 %v467, 7
      %v469 = vsub.s32 %v466, %v468
      %v470 = vrot.slane %v463, %v469
      %v472 = vunpack.c.l.s4 1983009808
      %v473 = vunpack.c.0.s8 %v472
      %v474 = vlaneseq
      %v475 = vshrl.u32 %v474, 7
      %v476 = vsub.s32 %v473, %v475
      %v477 = vrot.slane %v459, %v476
      %v478 = vcombine.low %v460, %v460
      %v480 = vunpack.c.l.s4 1983009808
      %v481 = vunpack.c.0.s8 %v480
      %v482 = vlaneseq
      %v483 = vshrl.u32 %v482, 7
      %v484 = vsub.s32 %v481, %v483
      %v485 = vrot.slane %v478, %v484
      %486 = vrot.lane.b32.xlu0 %v470, 88
      %v487 = vpop.permute.xlu0 %486
      %488 = vrot.lane.b32.xlu0 %v477, 88
      %v489 = vpop.permute.xlu0 %488
      %490 = vrot.lane.b32.xlu0 %v485, 88
      %v491 = vpop.permute.xlu0 %490
      %v492 = vrot.slane %v487, 4
      %v493 = vrot.slane %v489, 4
      %v494 = vrot.slane %v491, 4
      %v495 = vsel %vm399, %v492, %v493
      %vm496 = vcmask 719872
      %v497 = vsel %vm496, %v487, %v495
      %v498 = vsel %vm399, %v493, %v494
      %v499 = vsel %vm496, %v489, %v498
      %v500 = vsel %vm496, %v491, %v494
      %504 = vst [vmem:[#allocation2 + $0x14] sm:$0xcc] %v497
      %505 = vst [vmem:[#allocation2 + $0x1c] sm:$0xcc] %v499
      %506 = vst [vmem:[#allocation2 + $0x24] sm:$0xc] %v500
      %v507 = vld [vmem:[%s303] sm:$0xff]
      %v508 = vld [vmem:[%s303 + $0x8] sm:$0xf]
      %v511 = vcombine.high %v507, %v507
      %v513 = vunpack.c.l.s4 1983009808
      %v514 = vunpack.c.0.s8 %v513
      %v515 = vlaneseq
      %v516 = vshrl.u32 %v515, 7
      %v517 = vsub.s32 %v514, %v516
      %v518 = vrot.slane %v507, %v517
      %v520 = vunpack.c.l.s4 1983009808
      %v521 = vunpack.c.0.s8 %v520
      %v522 = vlaneseq
      %v523 = vshrl.u32 %v522, 7
      %v524 = vsub.s32 %v521, %v523
      %v525 = vrot.slane %v511, %v524
      %v527 = vunpack.c.l.s4 1983009808
      %v528 = vunpack.c.0.s8 %v527
      %v529 = vlaneseq
      %v530 = vshrl.u32 %v529, 7
      %v531 = vsub.s32 %v528, %v530
      %v532 = vrot.slane %v508, %v531
      %533 = vrot.lane.b32.xlu0 %v518, 87
      %v534 = vpop.permute.xlu0 %533
      %535 = vrot.lane.b32.xlu0 %v525, 87
      %v536 = vpop.permute.xlu0 %535
      %537 = vrot.lane.b32.xlu0 %v532, 87
      %v538 = vpop.permute.xlu0 %537
      %v539 = vrot.slane %v534, 4
      %v540 = vrot.slane %v536, 4
      %v541 = vrot.slane %v538, 4
      %v542 = vsel %vm399, %v539, %v540
      %vm543 = vcmask 711680
      %v544 = vsel %vm543, %v534, %v542
      %v545 = vsel %vm399, %v540, %v541
      %v546 = vsel %vm543, %v536, %v545
      %v547 = vsel %vm543, %v538, %v541
      %551 = vst [vmem:[#allocation2 + $0x28] sm:$0x33] %v544
      %552 = vst [vmem:[#allocation2 + $0x30] sm:$0x33] %v546
      %553 = vst [vmem:[#allocation2 + $0x38] sm:$0x3] %v547
      %v554 = vld [vmem:[%s303] sm:$0xff]
      %v555 = vld [vmem:[%s303 + $0x8] sm:$0xf]
      %v558 = vcombine.low %v554, %v554
      %v560 = vunpack.c.l.s4 1983009808
      %v561 = vunpack.c.0.s8 %v560
      %v562 = vlaneseq
      %v563 = vshrl.u32 %v562, 7
      %v564 = vsub.s32 %v561, %v563
      %v565 = vrot.slane %v558, %v564
      %v567 = vunpack.c.l.s4 1983009808
      %v568 = vunpack.c.0.s8 %v567
      %v569 = vlaneseq
      %v570 = vshrl.u32 %v569, 7
      %v571 = vsub.s32 %v568, %v570
      %v572 = vrot.slane %v554, %v571
      %v573 = vcombine.low %v555, %v555
      %v575 = vunpack.c.l.s4 1983009808
      %v576 = vunpack.c.0.s8 %v575
      %v577 = vlaneseq
      %v578 = vshrl.u32 %v577, 7
      %v579 = vsub.s32 %v576, %v578
      %v580 = vrot.slane %v573, %v579
      %581 = vrot.lane.b32.xlu0 %v565, 86
      %v582 = vpop.permute.xlu0 %581
      %583 = vrot.lane.b32.xlu0 %v572, 86
      %v584 = vpop.permute.xlu0 %583
      %585 = vrot.lane.b32.xlu0 %v580, 86
      %v586 = vpop.permute.xlu0 %585
      %v587 = vrot.slane %v582, 4
      %v588 = vrot.slane %v584, 4
      %v589 = vrot.slane %v586, 4
      %v590 = vsel %vm399, %v587, %v588
      %vm591 = vcmask 703488
      %v592 = vsel %vm591, %v582, %v590
      %v593 = vsel %vm399, %v588, %v589
      %v594 = vsel %vm591, %v584, %v593
      %v595 = vsel %vm591, %v586, %v589
      %599 = vst [vmem:[#allocation2 + $0x28] sm:$0xcc] %v592
      %600 = vst [vmem:[#allocation2 + $0x30] sm:$0xcc] %v594
      %601 = vst [vmem:[#allocation2 + $0x38] sm:$0xc] %v595
      %v602 = vld [vmem:[%s303] sm:$0xff]
      %v603 = vld [vmem:[%s303 + $0x8] sm:$0xf]
      %v606 = vcombine.high %v602, %v602
      %v608 = vunpack.c.l.s4 1983009808
      %v609 = vunpack.c.0.s8 %v608
      %v610 = vlaneseq
      %v611 = vshrl.u32 %v610, 7
      %v612 = vsub.s32 %v609, %v611
      %v613 = vrot.slane %v602, %v612
      %v615 = vunpack.c.l.s4 1983009808
      %v616 = vunpack.c.0.s8 %v615
      %v617 = vlaneseq
      %v618 = vshrl.u32 %v617, 7
      %v619 = vsub.s32 %v616, %v618
      %v620 = vrot.slane %v606, %v619
      %v622 = vunpack.c.l.s4 1983009808
      %v623 = vunpack.c.0.s8 %v622
      %v624 = vlaneseq
      %v625 = vshrl.u32 %v624, 7
      %v626 = vsub.s32 %v623, %v625
      %v627 = vrot.slane %v603, %v626
      %628 = vrot.lane.b32.xlu0 %v613, 48
      %v629 = vpop.permute.xlu0 %628
      %630 = vrot.lane.b32.xlu0 %v620, 48
      %v631 = vpop.permute.xlu0 %630
      %632 = vrot.lane.b32.xlu0 %v627, 48
      %v633 = vpop.permute.xlu0 %632
      %v634 = vrot.slane %v629, 4
      %v635 = vrot.slane %v631, 4
      %v636 = vrot.slane %v633, 4
      %v637 = vsel %vm399, %v634, %v635
      %vm638 = vcmask 392192
      %v639 = vsel %vm638, %v629, %v637
      %v640 = vsel %vm399, %v635, %v636
      %v641 = vsel %vm638, %v631, %v640
      %v642 = vsel %vm638, %v633, %v636
      %646 = vst [vmem:[#allocation2 + $0x3c] sm:$0x33] %v639
      %647 = vst [vmem:[#allocation2 + $0x44] sm:$0x33] %v641
      %648 = vst [vmem:[#allocation2 + $0x4c] sm:$0x3] %v642
      %v649 = vld [vmem:[%s303] sm:$0xff]
      %v650 = vld [vmem:[%s303 + $0x8] sm:$0xf]
      %v653 = vcombine.low %v649, %v649
      %v655 = vunpack.c.l.s4 1983009808
      %v656 = vunpack.c.0.s8 %v655
      %v657 = vlaneseq
      %v658 = vshrl.u32 %v657, 7
      %v659 = vsub.s32 %v656, %v658
      %v660 = vrot.slane %v653, %v659
      %v662 = vunpack.c.l.s4 1983009808
      %v663 = vunpack.c.0.s8 %v662
      %v664 = vlaneseq
      %v665 = vshrl.u32 %v664, 7
      %v666 = vsub.s32 %v663, %v665
      %v667 = vrot.slane %v649, %v666
      %v668 = vcombine.low %v650, %v650
      %v670 = vunpack.c.l.s4 1983009808
      %v671 = vunpack.c.0.s8 %v670
      %v672 = vlaneseq
      %v673 = vshrl.u32 %v672, 7
      %v674 = vsub.s32 %v671, %v673
      %v675 = vrot.slane %v668, %v674
      %676 = vrot.lane.b32.xlu0 %v660, 47
      %v677 = vpop.permute.xlu0 %676
      %678 = vrot.lane.b32.xlu0 %v667, 47
      %v679 = vpop.permute.xlu0 %678
      %680 = vrot.lane.b32.xlu0 %v675, 47
      %v681 = vpop.permute.xlu0 %680
      %v682 = vrot.slane %v677, 4
      %v683 = vrot.slane %v679, 4
      %v684 = vrot.slane %v681, 4
      %v685 = vsel %vm399, %v682, %v683
      %vm686 = vcmask 384000
      %v687 = vsel %vm686, %v677, %v685
      %v688 = vsel %vm399, %v683, %v684
      %v689 = vsel %vm686, %v679, %v688
      %v690 = vsel %vm686, %v681, %v684
      %694 = vst [vmem:[#allocation2 + $0x3c] sm:$0xcc] %v687
      %695 = vst [vmem:[#allocation2 + $0x44] sm:$0xcc] %v689
      %696 = vst [vmem:[#allocation2 + $0x4c] sm:$0xc] %v690
      %v697 = vld [vmem:[%s303] sm:$0xff]
      %v698 = vld [vmem:[%s303 + $0x8] sm:$0xf]
      %v701 = vcombine.high %v697, %v697
      %v703 = vunpack.c.l.s4 1983009808
      %v704 = vunpack.c.0.s8 %v703
      %v705 = vlaneseq
      %v706 = vshrl.u32 %v705, 7
      %v707 = vsub.s32 %v704, %v706
      %v708 = vrot.slane %v697, %v707
      %v710 = vunpack.c.l.s4 1983009808
      %v711 = vunpack.c.0.s8 %v710
      %v712 = vlaneseq
      %v713 = vshrl.u32 %v712, 7
      %v714 = vsub.s32 %v711, %v713
      %v715 = vrot.slane %v701, %v714
      %v717 = vunpack.c.l.s4 1983009808
      %v718 = vunpack.c.0.s8 %v717
      %v719 = vlaneseq
      %v720 = vshrl.u32 %v719, 7
      %v721 = vsub.s32 %v718, %v720
      %v722 = vrot.slane %v698, %v721
      %723 = vrot.lane.b32.xlu0 %v708, 46
      %v724 = vpop.permute.xlu0 %723
      %725 = vrot.lane.b32.xlu0 %v715, 46
      %v726 = vpop.permute.xlu0 %725
      %727 = vrot.lane.b32.xlu0 %v722, 46
      %v728 = vpop.permute.xlu0 %727
      %v729 = vrot.slane %v724, 4
      %v730 = vrot.slane %v726, 4
      %v731 = vrot.slane %v728, 4
      %v732 = vsel %vm399, %v729, %v730
      %vm733 = vcmask 375808
      %v734 = vsel %vm733, %v724, %v732
      %v735 = vsel %vm399, %v730, %v731
      %v736 = vsel %vm733, %v726, %v735
      %v737 = vsel %vm733, %v728, %v731
      %741 = vst [vmem:[#allocation2 + $0x50] sm:$0x33] %v734
      %742 = vst [vmem:[#allocation2 + $0x58] sm:$0x33] %v736
      %743 = vst [vmem:[#allocation2 + $0x60] sm:$0x3] %v737
      %v744 = vld [vmem:[%s1] sm:$0xf]
      %v745 = vld [vmem:[%s1 + $0x4] sm:$0xf]
      %v746 = vld [vmem:[#allocation2] sm:$0xff]
      %v747 = vld [vmem:[#allocation2 + $0x8] sm:$0xff]
      %v748 = vld [vmem:[#allocation2 + $0x10] sm:$0xf]
      %v749 = vld [vmem:[#allocation2 + $0x14] sm:$0xff]
      %v750 = vld [vmem:[#allocation2 + $0x1c] sm:$0xff]
      %v751 = vld [vmem:[#allocation2 + $0x24] sm:$0xf]
      %v752 = vld [vmem:[#allocation2 + $0x28] sm:$0xff]
      %v753 = vld [vmem:[#allocation2 + $0x30] sm:$0xff]
      %v754 = vld [vmem:[#allocation2 + $0x38] sm:$0xf]
      %v755 = vld [vmem:[#allocation2 + $0x3c] sm:$0xff]
      %v756 = vld [vmem:[#allocation2 + $0x44] sm:$0xff]
      %v757 = vld [vmem:[#allocation2 + $0x4c] sm:$0xf]
      %v758 = vld [vmem:[#allocation2 + $0x50] sm:$0x33]
      %v759 = vld [vmem:[#allocation2 + $0x58] sm:$0x33]
      %v760 = vld [vmem:[#allocation2 + $0x60] sm:$0x3]
      %v761 = vld [vmem:[%s2] sm:$0xff]
      %v762 = vld [vmem:[%s2 + $0x8] sm:$0xff]
      %764 = vset.pattern.permute.xlu0 0
      %765 = vperm.xlu0 %764, %v761
      %v766 = vpop.permute.xlu0 %765
      %769 = vset.pattern.permute.xlu0 0
      %770 = vperm.xlu0 %769, %v762
      %v771 = vpop.permute.xlu0 %770
      %v775 = vunpack.c.l.b16 %v744
      %v776 = vunpack.c.l.b16 %v745
      %v777 = vpack.c.b16 %v776, %v775
      %v793 = vunpack.c.l.b16 %v746
      %v794 = vunpack.c.h.b16 %v746
      %v795 = vunpack.c.l.b16 %v747
      %v796 = vunpack.c.h.b16 %v747
      %v797 = vunpack.c.l.b16 %v748
      %v798 = vunpack.c.l.b16 %v749
      %v799 = vunpack.c.h.b16 %v749
      %v800 = vunpack.c.l.b16 %v750
      %v801 = vunpack.c.h.b16 %v750
      %v802 = vunpack.c.l.b16 %v751
      %v803 = vunpack.c.l.b16 %v752
      %v804 = vunpack.c.h.b16 %v752
      %v805 = vunpack.c.l.b16 %v753
      %v806 = vunpack.c.h.b16 %v753
      %v807 = vunpack.c.l.b16 %v754
      %v808 = vunpack.c.l.b16 %v755
      %v809 = vunpack.c.h.b16 %v755
      %v810 = vunpack.c.l.b16 %v756
      %v811 = vunpack.c.h.b16 %v756
      %v812 = vunpack.c.l.b16 %v757
      %v813 = vunpack.c.l.b16 %v758
      %v814 = vunpack.c.h.b16 %v758
      %v815 = vunpack.c.l.b16 %v759
      %v816 = vunpack.c.h.b16 %v759
      %v817 = vunpack.c.l.b16 %v760
      %v818 = vpack.c.b16 %v798, %v793
      %v819 = vpack.c.b16 %v799, %v794
      %v820 = vpack.c.b16 %v800, %v795
      %v821 = vpack.c.b16 %v801, %v796
      %v822 = vpack.c.b16 %v802, %v797
      %v823 = vpack.c.b16 %v808, %v803
      %v824 = vpack.c.b16 %v809, %v804
      %v825 = vpack.c.b16 %v810, %v805
      %v826 = vpack.c.b16 %v811, %v806
      %v827 = vpack.c.b16 %v812, %v807
      %v828 = vpack.c.b16 %v813, %v813
      %v829 = vpack.c.b16 %v814, %v814
      %v830 = vpack.c.b16 %v815, %v815
      %v831 = vpack.c.b16 %v816, %v816
      %v832 = vpack.c.b16 %v817, %v817
      %vm843 = vcmask 293888
      %v845 = vsel %vm843, %v777, 0
      %vm847 = vcmask 1041408
      %v849 = vsel %vm847, %v828, 0
      %v852 = vsel %vm847, %v829, 0
      %v855 = vsel %vm847, %v830, 0
      %v858 = vsel %vm847, %v831, 0
      %v861 = vsel %vm847, %v832, 0
      %863 = vmatprep.subr.bf16.mxu0 0
      %864 = vmatpush1.bf16.msra.mxu0 0
      %865 = vmatprep.subr.bf16.mxu0 0
      %866 = vmatpush1.bf16.msra.mxu0 0
      %867 = vmatprep.subr.bf16.mxu0 0
      %868 = vmatpush1.bf16.msra.mxu0 0
      %869 = vmatprep.subr.bf16.mxu0 0
      %870 = vmatpush1.bf16.msra.mxu0 0
      %871 = vmatprep.subr.bf16.mxu0 0
      %872 = vmatpush1.bf16.msra.mxu0 0
      %873 = vmatprep.subr.bf16.mxu0 %v852
      %874 = vmatpush1.bf16.msra.mxu0 %v849
      %875 = vmatprep.subr.bf16.mxu0 %v824
      %876 = vmatpush1.bf16.msra.mxu0 %v823
      %877 = vmatprep.subr.bf16.mxu0 %v819
      %878 = vmatpush1.bf16.msra.mxu0 %v818
      %879 = vmatprep.subr.bf16.mxu0 0
      %880 = vmatpush2.bf16.msra.mxu0 0
      %881 = vmatprep.subr.bf16.mxu0 0
      %882 = vmatpush2.bf16.msra.mxu0 0
      %883 = vmatprep.subr.bf16.mxu0 0
      %884 = vmatpush2.bf16.msra.mxu0 0
      %885 = vmatprep.subr.bf16.mxu0 0
      %886 = vmatpush2.bf16.msra.mxu0 0
      %887 = vmatprep.subr.bf16.mxu0 0
      %888 = vmatpush2.bf16.msra.mxu0 0
      %889 = vmatprep.subr.bf16.mxu0 0
      %890 = vmatpush2.bf16.msra.mxu0 0
      %891 = vmatprep.subr.bf16.mxu0 0
      %892 = vmatpush2.bf16.msra.mxu0 0
      %893 = vmatprep.subr.bf16.mxu0 0
      %894 = vmatpush2.bf16.msra.mxu0 0
      %895 = vmatprep.mubr.bf16.mxu0 0
      %896 = vmatmul.mubr.bf16.gmra.mxu0 %v845
      %v897 = vpop.f32.mrf.mxu0
      %v898 = vadd.f32 %v766, %v897
      %v899 = vpop.f32.mrf.mxu0
      %v900 = vadd.f32 %v766, %v899
      %v901 = vpop.f32.mrf.mxu0
      %v902 = vadd.f32 %v771, %v901
      %v903 = vpop.f32.mrf.mxu0
      %v904 = vadd.f32 %v771, %v903
      %905 = vdwg.mxu0
      %906 = vmatprep.subr.bf16.mxu0 0
      %907 = vmatpush1.bf16.msra.mxu0 0
      %908 = vmatprep.subr.bf16.mxu0 0
      %909 = vmatpush1.bf16.msra.mxu0 0
      %910 = vmatprep.subr.bf16.mxu0 0
      %911 = vmatpush1.bf16.msra.mxu0 0
      %912 = vmatprep.subr.bf16.mxu0 0
      %913 = vmatpush1.bf16.msra.mxu0 0
      %914 = vmatprep.subr.bf16.mxu0 0
      %915 = vmatpush1.bf16.msra.mxu0 0
      %916 = vmatprep.subr.bf16.mxu0 %v858
      %917 = vmatpush1.bf16.msra.mxu0 %v855
      %918 = vmatprep.subr.bf16.mxu0 %v826
      %919 = vmatpush1.bf16.msra.mxu0 %v825
      %920 = vmatprep.subr.bf16.mxu0 %v821
      %921 = vmatpush1.bf16.msra.mxu0 %v820
      %922 = vmatprep.subr.bf16.mxu0 0
      %923 = vmatpush2.bf16.msra.mxu0 0
      %924 = vmatprep.subr.bf16.mxu0 0
      %925 = vmatpush2.bf16.msra.mxu0 0
      %926 = vmatprep.subr.bf16.mxu0 0
      %927 = vmatpush2.bf16.msra.mxu0 0
      %928 = vmatprep.subr.bf16.mxu0 0
      %929 = vmatpush2.bf16.msra.mxu0 0
      %930 = vmatprep.subr.bf16.mxu0 0
      %931 = vmatpush2.bf16.msra.mxu0 0
      %932 = vmatprep.subr.bf16.mxu0 0
      %933 = vmatpush2.bf16.msra.mxu0 0
      %934 = vmatprep.subr.bf16.mxu0 0
      %935 = vmatpush2.bf16.msra.mxu0 0
      %936 = vmatprep.subr.bf16.mxu0 0
      %937 = vmatpush2.bf16.msra.mxu0 0
      %938 = vmatprep.mubr.bf16.mxu0 0
      %939 = vmatmul.mubr.bf16.gmra.mxu0 %v845
      %v940 = vpop.f32.mrf.mxu0
      %v941 = vadd.f32 %v766, %v940
      %v942 = vpop.f32.mrf.mxu0
      %v943 = vadd.f32 %v766, %v942
      %v944 = vpop.f32.mrf.mxu0
      %v945 = vadd.f32 %v771, %v944
      %v946 = vpop.f32.mrf.mxu0
      %v947 = vadd.f32 %v771, %v946
      %948 = vdwg.mxu0
      %949 = vmatprep.subr.bf16.mxu0 0
      %950 = vmatpush1.bf16.msra.mxu0 0
      %951 = vmatprep.subr.bf16.mxu0 0
      %952 = vmatpush1.bf16.msra.mxu0 0
      %953 = vmatprep.subr.bf16.mxu0 0
      %954 = vmatpush1.bf16.msra.mxu0 0
      %955 = vmatprep.subr.bf16.mxu0 0
      %956 = vmatpush1.bf16.msra.mxu0 0
      %957 = vmatprep.subr.bf16.mxu0 0
      %958 = vmatpush1.bf16.msra.mxu0 0
      %959 = vmatprep.subr.bf16.mxu0 0
      %960 = vmatpush1.bf16.msra.mxu0 %v861
      %961 = vmatprep.subr.bf16.mxu0 0
      %962 = vmatpush1.bf16.msra.mxu0 %v827
      %963 = vmatprep.subr.bf16.mxu0 0
      %964 = vmatpush1.bf16.msra.mxu0 %v822
      %965 = vmatprep.subr.bf16.mxu0 0
      %966 = vmatpush2.bf16.msra.mxu0 0
      %967 = vmatprep.subr.bf16.mxu0 0
      %968 = vmatpush2.bf16.msra.mxu0 0
      %969 = vmatprep.subr.bf16.mxu0 0
      %970 = vmatpush2.bf16.msra.mxu0 0
      %971 = vmatprep.subr.bf16.mxu0 0
      %972 = vmatpush2.bf16.msra.mxu0 0
      %973 = vmatprep.subr.bf16.mxu0 0
      %974 = vmatpush2.bf16.msra.mxu0 0
      %975 = vmatprep.subr.bf16.mxu0 0
      %976 = vmatpush2.bf16.msra.mxu0 0
      %977 = vmatprep.subr.bf16.mxu0 0
      %978 = vmatpush2.bf16.msra.mxu0 0
      %979 = vmatprep.subr.bf16.mxu0 0
      %980 = vmatpush2.bf16.msra.mxu0 0
      %981 = vmatprep.mubr.bf16.mxu0 0
      %982 = vmatmul.mubr.bf16.gmra.mxu0 %v845
      %v983 = vpop.f32.mrf.mxu0
      %v984 = vadd.f32 %v766, %v983
      %v985 = vpop.f32.mrf.mxu0
      %v986 = vpop.f32.mrf.mxu0
      %v987 = vadd.f32 %v771, %v986
      %v988 = vpop.f32.mrf.mxu0
      %989 = vdwg.mxu0
      %vm990 = vcmp.gt.f32.partialorder %v898, 0.0
      %vm991 = vcmp.gt.f32.partialorder %v900, 0.0
      %vm992 = vcmp.gt.f32.partialorder %v941, 0.0
      %vm993 = vcmp.gt.f32.partialorder %v943, 0.0
      %vm994 = vcmp.gt.f32.partialorder %v984, 0.0
      %v995 = vmul.f32 %v898, 0.2
      %v996 = vmul.f32 %v900, 0.2
      %v997 = vmul.f32 %v941, 0.2
      %v998 = vmul.f32 %v943, 0.2
      %v999 = vmul.f32 %v984, 0.2
      %v1000 = vsel %vm990, %v898, %v995
      %v1001 = vsel %vm991, %v900, %v996
      %v1002 = vsel %vm992, %v941, %v997
      %v1003 = vsel %vm993, %v943, %v998
      %v1004 = vsel %vm994, %v984, %v999
      %v1005 = vxor.u32 %v902, 2147483648
      %v1006 = vxor.u32 %v904, 2147483648
      %v1007 = vxor.u32 %v945, 2147483648
      %v1008 = vxor.u32 %v947, 2147483648
      %v1009 = vxor.u32 %v987, 2147483648
      %v1010 = vmul.f32 %v1005, 1.442695
      %v1011 = vpow.pop %v1010
      %v1012 = vmul.f32 %v1006, 1.442695
      %v1013 = vpow.pop %v1012
      %v1014 = vmul.f32 %v1007, 1.442695
      %v1015 = vpow.pop %v1014
      %v1016 = vmul.f32 %v1008, 1.442695
      %v1017 = vpow.pop %v1016
      %v1018 = vmul.f32 %v1009, 1.442695
      %v1019 = vpow.pop %v1018
      %v1020 = vadd.f32 %v1011, 1.0
      %v1021 = vadd.f32 %v1013, 1.0
      %v1022 = vadd.f32 %v1015, 1.0
      %v1023 = vadd.f32 %v1017, 1.0
      %v1024 = vadd.f32 %v1019, 1.0
      %v1025 = vrcp.pop %v1020
      %v1026 = vmul.f32 1.0, %v1025
      %v1027 = vrcp.pop %v1021
      %v1028 = vmul.f32 1.0, %v1027
      %v1029 = vrcp.pop %v1022
      %v1030 = vmul.f32 1.0, %v1029
      %v1031 = vrcp.pop %v1023
      %v1032 = vmul.f32 1.0, %v1031
      %v1033 = vrcp.pop %v1024
      %v1034 = vmul.f32 1.0, %v1033
      %v1035 = vmul.f32 %v1000, %v1026
      %v1036 = vmul.f32 %v1001, %v1028
      %v1037 = vmul.f32 %v1002, %v1030
      %v1038 = vmul.f32 %v1003, %v1032
      %v1039 = vmul.f32 %v1004, %v1034
      %v1040 = vld [vmem:[%s3] sm:$0x1f]
      %v1042 = vlaneseq
      %v1043 = vshrl.u32 %v1042, 7
      %v1044 = vsub.s32 0, %v1043
      %v1045 = vrot.slane %v1040, %v1044
      %v1046 = vlaneseq
      %v1047 = vshrl.u32 %v1046, 7
      %v1048 = vsub.s32 1, %v1047
      %v1049 = vrot.slane %v1040, %v1048
      %v1050 = vlaneseq
      %v1051 = vshrl.u32 %v1050, 7
      %v1052 = vsub.s32 2, %v1051
      %v1053 = vrot.slane %v1040, %v1052
      %v1054 = vlaneseq
      %v1055 = vshrl.u32 %v1054, 7
      %v1056 = vsub.s32 3, %v1055
      %v1057 = vrot.slane %v1040, %v1056
      %v1058 = vlaneseq
      %v1059 = vshrl.u32 %v1058, 7
      %v1060 = vsub.s32 4, %v1059
      %v1061 = vrot.slane %v1040, %v1060
      %v1067 = vmul.f32 %v1035, %v1045
      %v1068 = vmul.f32 %v1036, %v1049
      %v1069 = vmul.f32 %v1037, %v1053
      %v1070 = vmul.f32 %v1038, %v1057
      %v1071 = vmul.f32 %v1039, %v1061
      %v1072 = vadd.f32 %v1067, %v1068
      %v1073 = vadd.f32 %v1072, %v1069
      %v1074 = vadd.f32 %v1073, %v1070
      %v1075 = vadd.f32 %v1074, %v1071
      %1076 = vadd.xlane.f32.xlu0 %v1075
      %v1077 = vpop.xlane.xlu0 %1076
      %vm1078 = vcmask 7168
      %1079 = vst.msk [vmem:[%s321] sm:$0xff] %vm1078, %v1077
      %v1080 = vmul.f32 %v1067, %v1067
      %v1081 = vmul.f32 %v1068, %v1068
      %v1082 = vmul.f32 %v1069, %v1069
      %v1083 = vmul.f32 %v1070, %v1070
      %v1084 = vmul.f32 %v1071, %v1071
      %v1085 = vadd.f32 %v1080, %v1081
      %v1086 = vadd.f32 %v1085, %v1082
      %v1087 = vadd.f32 %v1086, %v1083
      %v1088 = vadd.f32 %v1087, %v1084
      %1089 = vadd.xlane.f32.xlu0 %v1088
      %v1090 = vpop.xlane.xlu0 %1089
      %1091 = vst.msk [vmem:[%s329] sm:$0xff] %vm1078, %v1090
      %v1092 = vpack.c.bf16 %v1035, %v1035
      %v1093 = vpack.c.bf16 %v1036, %v1036
      %v1094 = vpack.c.bf16 %v1037, %v1037
      %v1095 = vpack.c.bf16 %v1038, %v1038
      %v1096 = vpack.c.bf16 %v1039, %v1039
      %v1102 = vunpack.c.l.b16 %v1092
      %v1103 = vunpack.c.l.b16 %v1093
      %v1104 = vunpack.c.l.b16 %v1094
      %v1105 = vunpack.c.l.b16 %v1095
      %v1106 = vunpack.c.l.b16 %v1096
      %v1107 = vpack.c.b16 %v1103, %v1102
      %v1108 = vpack.c.b16 %v1105, %v1104
      %v1109 = vpack.c.b16 %v1106, %v1106
      %1113 = vst [vmem:[%s312] sm:$0xff] %v1107
      %1114 = vst [vmem:[%s312 + $0x8] sm:$0xff] %v1108
      %1115 = vst [vmem:[%s312 + $0x10] sm:$0xf] %v1109
      %s1116 = smul.u32 5, %s23
      %p1117 = scmp.lt.s32.totalorder %s22, 1
      %s1118 = scalar_select %p1117, %s22, 1
      %p1119 = scmp.lt.s32.totalorder %s1116, 9
      %s1120 = scalar_select %p1119, %s1116, 9
      %s1121 = smul.addr %s1118, 10
      %s1122 = sadd.s32 %s1120, %s1121
      %s1123 = smul.addr %s1122, 4
      %s1124 = scalar_lea.vmem %s4, %s1123
      %p1125 = scmp.lt.s32.totalorder %s22, 1
      %s1126 = scalar_select %p1125, %s22, 1
      %p1127 = scmp.lt.s32.totalorder %s23, 1
      %s1128 = scalar_select %p1127, %s23, 1
      %s1129 = smul.addr %s1126, 2
      %s1130 = sadd.s32 %s1128, %s1129
      %s1131 = smul.addr %s1130, 8
      %s1132 = scalar_lea.vmem %s5, %s1131
      %p1133 = scmp.lt.s32.totalorder %s22, 1
      %s1134 = scalar_select %p1133, %s22, 1
      %p1135 = scmp.lt.s32.totalorder %s23, 1
      %s1136 = scalar_select %p1135, %s23, 1
      %s1137 = smul.addr %s1134, 2
      %s1138 = sadd.s32 %s1136, %s1137
      %s1139 = smul.addr %s1138, 8
      %s1140 = scalar_lea.vmem %s6, %s1139
      // Predicated region
      $region37: #{gated_deconv2d.2} parent=35 // pred_check
        %p1141 = pneg %p141
      $region38: #{gated_deconv2d.2} parent=35 // pred_check_branch
        %1143 = sbr.rel (%p1141) target = $region40
      $region39: #{gated_deconv2d.2} parent=35 // pred_region
        %s1144 = smul.u32 5, %s23
      $region40: #{gated_deconv2d.2} parent=35 // pred_fallthru
        _
      // Predicated region
      $region41: #{gated_deconv2d.2} parent=35 // pred_check
        %p1145 = pneg %p169
      $region42: #{gated_deconv2d.2} parent=35 // pred_check_branch
        %1147 = sbr.rel (%p1145) target = $region44
      $region43: #{gated_deconv2d.2} parent=35 // pred_region
        _
      $region44: #{gated_deconv2d.2} parent=35 // pred_fallthru
        _
      // Predicated region
      $region45: #{gated_deconv2d.2} parent=35 // pred_check
        %p1148 = pneg %p197
      $region46: #{gated_deconv2d.2} parent=35 // pred_check_branch
        %1150 = sbr.rel (%p1148) target = $region48
      $region47: #{gated_deconv2d.2} parent=35 // pred_region
        _
      $region48: #{gated_deconv2d.2} parent=35 // pred_fallthru
        _
    $region36: #{gated_deconv2d.2} parent=5 // pred_fallthru
      _
    %p1151 = scmp.le.s32.totalorder 2, %s13
    // Predicated region
    $region49: #{gated_deconv2d.2} parent=5 // pred_check
      %p1152 = pneg %p1151
    $region50: #{gated_deconv2d.2} parent=5 // pred_check_branch
      %1154 = sbr.rel (%p1152) target = $region52
    $region51: #{gated_deconv2d.2} parent=5 // pred_region
      %s1155 = ssub.s32 %s13, 2
      // Predicated region
      $region53: #{gated_deconv2d.2} parent=51 // pred_check
        %p1156 = pneg %p147
      $region54: #{gated_deconv2d.2} parent=51 // pred_check_branch
        %1158 = sbr.rel (%p1156) target = $region56
      $region55: #{gated_deconv2d.2} parent=51 // pred_region
        %s1159 = smul.u32 5, %s25
        %p1160 = scmp.lt.s32.totalorder %s24, 1
        %s1161 = scalar_select %p1160, %s24, 1
        %p1162 = scmp.lt.s32.totalorder %s1159, 9
        %s1163 = scalar_select %p1162, %s1159, 9
        %s1164 = smul.addr %s1161, 10
        %s1165 = sadd.s32 %s1163, %s1164
        %s1166 = smul.addr %s1165, 4
        %s1167 = scalar_lea.vmem %s4, %s1166
      $region56: #{gated_deconv2d.2} parent=51 // pred_fallthru
        _
      // Predicated region
      $region57: #{gated_deconv2d.2} parent=51 // pred_check
        %p1168 = pneg %p175
      $region58: #{gated_deconv2d.2} parent=51 // pred_check_branch
        %1170 = sbr.rel (%p1168) target = $region60
      $region59: #{gated_deconv2d.2} parent=51 // pred_region
        %p1171 = scmp.lt.s32.totalorder %s24, 1
        %s1172 = scalar_select %p1171, %s24, 1
        %p1173 = scmp.lt.s32.totalorder %s25, 1
        %s1174 = scalar_select %p1173, %s25, 1
        %s1175 = smul.addr %s1172, 2
        %s1176 = sadd.s32 %s1174, %s1175
        %s1177 = smul.addr %s1176, 8
        %s1178 = scalar_lea.vmem %s5, %s1177
      $region60: #{gated_deconv2d.2} parent=51 // pred_fallthru
        _
      // Predicated region
      $region61: #{gated_deconv2d.2} parent=51 // pred_check
        %p1179 = pneg %p203
      $region62: #{gated_deconv2d.2} parent=51 // pred_check_branch
        %1181 = sbr.rel (%p1179) target = $region64
      $region63: #{gated_deconv2d.2} parent=51 // pred_region
        %p1182 = scmp.lt.s32.totalorder %s24, 1
        %s1183 = scalar_select %p1182, %s24, 1
        %p1184 = scmp.lt.s32.totalorder %s25, 1
        %s1185 = scalar_select %p1184, %s25, 1
        %s1186 = smul.addr %s1183, 2
        %s1187 = sadd.s32 %s1185, %s1186
        %s1188 = smul.addr %s1187, 8
        %s1189 = scalar_lea.vmem %s6, %s1188
      $region64: #{gated_deconv2d.2} parent=51 // pred_fallthru
        _
    $region52: #{gated_deconv2d.2} parent=5 // pred_fallthru
      _
  $region6: #{gated_deconv2d.2} parent=0 // loop_footer
    %s17 = sadd.s32 1, %s13
  $region7: #{gated_deconv2d.2} parent=0 // loop_footer_branch
    %12 = sbr.rel target = $region3
  $region8: #{gated_deconv2d.2} parent=0 // loop_exit
    _

</llo_original>
